<compile_context>
chip_gen: v5e
topology: v5e:2x2
jax: 0.10.0
libtpu: 0.0.40
codegen_flags: <defaults>
</compile_context>

<pallas_src>
import math

import jax
import jax.numpy as jnp
from jax import lax
from jax.experimental import pallas as pl

# ----------------------------- problem sizes --------------------------------
B, S = 2, 8          # batch, sequence length
V = 64               # synthetic vocab size
D = 32               # bert_dim  (== LSTM hidden size since lstm_dim == -1)
H = D                # LSTM hidden size
F = 4 * D            # FFN inner dim
C = 4                # len(punctuation_dict): O, COMMA, PERIOD, QUESTION
CPAD = 128           # lane-dense padded head width (sliced back to C outside)


# ----------------------------- shared math -----------------------------------
def gelu_tanh(x):
    return 0.5 * x * (1.0 + jnp.tanh(0.7978845608028654 * (x + 0.044715 * x * x * x)))


def layer_norm(x, gamma, beta, eps=1e-5):
    mu = jnp.mean(x, axis=-1, keepdims=True)
    var = jnp.mean((x - mu) ** 2, axis=-1, keepdims=True)
    return (x - mu) * lax.rsqrt(var + eps) * gamma + beta


# =================== fused kernel: encoder + BiLSTM + head ====================
def fused_kernel(emb_ref, mask_ref,
                 wqkvo_ref, bqkvo_ref, lnp_ref,
                 w1_ref, b1_ref, w2_ref, b2_ref,
                 wi_ref, bi_ref, whh_ref, wlin_ref, blin_ref,
                 out_ref):
    # ---------------- synthetic BERT encoder layer (batch folded in) ---------
    x2 = emb_ref[...].reshape(B * S, D)                        # (B*S, D)
    wqkvo = wqkvo_ref[...]                                     # (D, 4D)
    bqkvo = bqkvo_ref[...]                                     # (1, 4D)
    lnp = lnp_ref[...]                                         # (4, D)

    qkv = (jnp.dot(x2, wqkvo[:, 0:3 * D], preferred_element_type=jnp.float32)
           + bqkvo[:, 0:3 * D])                                # (B*S, 3D)
    q3 = qkv[:, 0:D].reshape(B, S, D)
    k3 = qkv[:, D:2 * D].reshape(B, S, D)
    v3 = qkv[:, 2 * D:3 * D].reshape(B, S, D)

    scores = jnp.einsum('bqd,bkd->bqk', q3, k3,
                        preferred_element_type=jnp.float32) * (1.0 / math.sqrt(D))
    scores = scores + (mask_ref[...] - 1.0) * 1e9              # additive key mask
    scores = scores - jnp.max(scores, axis=-1, keepdims=True)
    e = jnp.exp(scores)
    attn = e * pl.reciprocal(jnp.sum(e, axis=-1, keepdims=True), approx=True)
    ctx = jnp.einsum('bqk,bkd->bqd', attn, v3,
                     preferred_element_type=jnp.float32).reshape(B * S, D)

    a_out = (jnp.dot(ctx, wqkvo[:, 3 * D:4 * D], preferred_element_type=jnp.float32)
             + bqkvo[:, 3 * D:4 * D])
    h1 = layer_norm(x2 + a_out, lnp[0:1, :], lnp[1:2, :])

    ff = gelu_tanh(jnp.dot(h1, w1_ref[...], preferred_element_type=jnp.float32)
                   + b1_ref[...])
    ff = jnp.dot(ff, w2_ref[...], preferred_element_type=jnp.float32) + b2_ref[...]
    h2 = layer_norm(h1 + ff, lnp[2:3, :], lnp[3:4, :])         # (B*S, D)

    # ---------------- bidirectional LSTM: merged fwd/bwd recurrence ----------
    # Input-gate projections for every timestep & both directions, hoisted out
    # of the recurrence: a single (B*S, D) @ (D, 8H) matmul.
    xg = (jnp.dot(h2, wi_ref[...], preferred_element_type=jnp.float32)
          + bi_ref[...]).reshape(B, S, 8 * H)
    xgf = xg[:, :, 0:4 * H]                                    # fwd input gates
    xgb = xg[:, :, 4 * H:8 * H]                                # bwd input gates

    # Block-embedded hidden state: rows [0:B] = forward (live cols [0:H]),
    # rows [B:2B] = backward (live cols [H:2H]).  One matmul against the
    # stacked whh = [whf; whb] drives both directions every step.
    row = lax.broadcasted_iota(jnp.int32, (2 * B, 2 * H), 0)
    col = lax.broadcasted_iota(jnp.int32, (2 * B, 2 * H), 1)
    dir_mask = jnp.where((row < B) == (col < H), 1.0, 0.0)

    whh = whh_ref[...]                                         # (2H, 4H)
    h_emb = jnp.zeros((2 * B, 2 * H), jnp.float32)
    c = jnp.zeros((2 * B, H), jnp.float32)
    hs_fwd, hs_bwd = [], []
    for t in range(S):                                         # S=8, static unroll
        # fwd rows consume x[t], bwd rows consume x[S-1-t]
        xg_t = jnp.concatenate([xgf[:, t, :], xgb[:, S - 1 - t, :]], axis=0)
        gates = xg_t + jnp.dot(h_emb, whh, preferred_element_type=jnp.float32)
        i = jax.nn.sigmoid(gates[:, 0:H])
        f = jax.nn.sigmoid(gates[:, H:2 * H])
        g = jnp.tanh(gates[:, 2 * H:3 * H])
        o = jax.nn.sigmoid(gates[:, 3 * H:4 * H])
        c = f * c + i * g
        h_new = o * jnp.tanh(c)                                # (2B, H) dense
        hs_fwd.append(h_new[:B])                               # fwd hidden @ time t
        hs_bwd.append(h_new[B:])                               # bwd hidden @ time S-1-t
        h_emb = jnp.concatenate([h_new, h_new], axis=-1) * dir_mask

    # ---------------- linear head: one lane-dense matmul ---------------------
    feats = jnp.stack(
        [jnp.concatenate([hs_fwd[s], hs_bwd[S - 1 - s]], axis=-1) for s in range(S)],
        axis=1)                                                # (B, S, 2H)
    logits = (jnp.dot(feats.reshape(B * S, 2 * H), wlin_ref[...],
                      preferred_element_type=jnp.float32) + blin_ref[...])
    out_ref[...] = logits.reshape(B, S, CPAD)


# ----------------------------- wrapper ----------------------------------------
def deep_punctuation_forward(ids, attn_mask, p):
    # glue (plain JAX): embedding gather + learned positions
    emb = (p['emb'][ids] + p['pos'][None, :, :]).astype(jnp.float32)   # (B, S, D)
    mask3 = attn_mask.astype(jnp.float32).reshape(B, 1, S)

    # pack the many tiny parameters into a few slabs (fewer DMA descriptors)
    wqkvo = jnp.concatenate([p['wq'], p['wk'], p['wv'], p['wo']], axis=1)   # (D, 4D)
    bqkvo = jnp.concatenate([p['bq'], p['bk'], p['bv'], p['bo']], axis=1)   # (1, 4D)
    lnp = jnp.concatenate([p['ln1g'], p['ln1b'], p['ln2g'], p['ln2b']], axis=0)  # (4, D)
    wi = jnp.concatenate([p['wif'], p['wib']], axis=1)                      # (D, 8H)
    bi = jnp.concatenate([p['bf'], p['bb']], axis=1)                        # (1, 8H)
    whh = jnp.concatenate([p['whf'], p['whb']], axis=0)                     # (2H, 4H)
    wlin_pad = jnp.zeros((2 * H, CPAD), jnp.float32).at[:, :C].set(p['wlin'])
    blin_pad = jnp.zeros((1, CPAD), jnp.float32).at[:, :C].set(p['blin'])

    out_pad = pl.pallas_call(
        fused_kernel,
        out_shape=jax.ShapeDtypeStruct((B, S, CPAD), jnp.float32),
    )(emb, mask3, wqkvo, bqkvo, lnp,
      p['w1'], p['b1'], p['w2'], p['b2'],
      wi, bi, whh, wlin_pad, blin_pad)
    return out_pad[..., :C]                                    # (B, S, C)


# ----------------------------- pure-JAX reference -----------------------------
def reference_forward(ids, attn_mask, p):
    emb = p['emb'][ids] + p['pos'][None, :, :]
    mask_f = attn_mask.astype(jnp.float32)

    def enc_one(h, m):
        q = h @ p['wq'] + p['bq']
        k = h @ p['wk'] + p['bk']
        v = h @ p['wv'] + p['bv']
        scores = q @ k.T * (1.0 / math.sqrt(D)) + (m - 1.0) * 1e9
        scores = scores - jnp.max(scores, axis=-1, keepdims=True)
        e = jnp.exp(scores)
        attn = e / jnp.sum(e, axis=-1, keepdims=True)
        a_out = (attn @ v) @ p['wo'] + p['bo']
        h1 = layer_norm(h + a_out, p['ln1g'], p['ln1b'])
        ff = gelu_tanh(h1 @ p['w1'] + p['b1']) @ p['w2'] + p['b2']
        return layer_norm(h1 + ff, p['ln2g'], p['ln2b'])

    def bilstm_one(x):
        def make_step(wih, whh, b):
            def step(carry, xt):
                h, c = carry
                gates = xt @ wih + h @ whh + b[0]
                i = jax.nn.sigmoid(gates[0:H])
                f = jax.nn.sigmoid(gates[H:2 * H])
                g = jnp.tanh(gates[2 * H:3 * H])
                o = jax.nn.sigmoid(gates[3 * H:4 * H])
                c_new = f * c + i * g
                h_new = o * jnp.tanh(c_new)
                return (h_new, c_new), h_new
            return step
        init = (jnp.zeros(H), jnp.zeros(H))
        _, hf = jax.lax.scan(make_step(p['wif'], p['whf'], p['bf']), init, x)
        _, hr = jax.lax.scan(make_step(p['wib'], p['whb'], p['bb']), init, x[::-1])
        feats = jnp.concatenate([hf, hr[::-1]], axis=-1)
        return feats @ p['wlin'] + p['blin'][0]

    h = jax.vmap(enc_one)(emb, mask_f)
    return jax.vmap(bilstm_one)(h)


# ----------------------------- main -------------------------------------------
if __name__ == "__main__":
    key = jax.random.PRNGKey(0)
    ks = jax.random.split(key, 32)

    def nrm(k, shape, scale=0.05):
        return (scale * jax.random.normal(k, shape)).astype(jnp.float32)

    params = {
        'emb': nrm(ks[0], (V, D), 0.1), 'pos': nrm(ks[1], (S, D), 0.1),
        'wq': nrm(ks[2], (D, D)), 'bq': nrm(ks[3], (1, D)),
        'wk': nrm(ks[4], (D, D)), 'bk': nrm(ks[5], (1, D)),
        'wv': nrm(ks[6], (D, D)), 'bv': nrm(ks[7], (1, D)),
        'wo': nrm(ks[8], (D, D)), 'bo': nrm(ks[9], (1, D)),
        'ln1g': jnp.ones((1, D), jnp.float32), 'ln1b': jnp.zeros((1, D), jnp.float32),
        'w1': nrm(ks[10], (D, F)), 'b1': nrm(ks[11], (1, F)),
        'w2': nrm(ks[12], (F, D)), 'b2': nrm(ks[13], (1, D)),
        'ln2g': jnp.ones((1, D), jnp.float32), 'ln2b': jnp.zeros((1, D), jnp.float32),
        'wif': nrm(ks[14], (D, 4 * H)), 'whf': nrm(ks[15], (H, 4 * H)), 'bf': nrm(ks[16], (1, 4 * H)),
        'wib': nrm(ks[17], (D, 4 * H)), 'whb': nrm(ks[18], (H, 4 * H)), 'bb': nrm(ks[19], (1, 4 * H)),
        'wlin': nrm(ks[20], (2 * H, C)), 'blin': nrm(ks[21], (1, C)),
    }

    ids = jax.random.randint(ks[22], (B, S), 0, V, dtype=jnp.int32)
    attn_masks = jnp.array([[1] * S, [1] * (S - 2) + [0] * 2], dtype=jnp.int32)

    out = deep_punctuation_forward(ids, attn_masks, params)
    out = jax.block_until_ready(out)

    ref = reference_forward(ids, attn_masks, params)
    assert out.shape == (B, S, C), out.shape
    assert bool(jnp.all(jnp.isfinite(out)))
    assert bool(jnp.allclose(out, ref, atol=5e-3, rtol=5e-3)), \
        f"max abs diff {float(jnp.max(jnp.abs(out - ref)))}"

    print("KERNEL_OK")
</pallas_src>

<mosaic_0001>
module attributes {stable_mosaic.version = 11 : i64} {
  func.func @fused_kernel(%arg0: memref<2x8x32xf32, #tpu.memory_space<vmem>>, %arg1: memref<2x1x8xf32, #tpu.memory_space<vmem>>, %arg2: memref<32x128xf32, #tpu.memory_space<vmem>>, %arg3: memref<1x128xf32, #tpu.memory_space<vmem>>, %arg4: memref<4x32xf32, #tpu.memory_space<vmem>>, %arg5: memref<32x128xf32, #tpu.memory_space<vmem>>, %arg6: memref<1x128xf32, #tpu.memory_space<vmem>>, %arg7: memref<128x32xf32, #tpu.memory_space<vmem>>, %arg8: memref<1x32xf32, #tpu.memory_space<vmem>>, %arg9: memref<32x256xf32, #tpu.memory_space<vmem>>, %arg10: memref<1x256xf32, #tpu.memory_space<vmem>>, %arg11: memref<64x128xf32, #tpu.memory_space<vmem>>, %arg12: memref<64x128xf32, #tpu.memory_space<vmem>>, %arg13: memref<1x128xf32, #tpu.memory_space<vmem>>, %arg14: memref<2x8x128xf32, #tpu.memory_space<vmem>>) attributes {dimension_semantics = [], scalar_prefetch = 0 : i64, scratch_operands = 0 : i64, tpu.core_type = #tpu.core_type<tc>} {
    %c0 = arith.constant 0 : index
    %c0_0 = arith.constant 0 : index
    %c0_1 = arith.constant 0 : index
    %0 = vector.load %arg0[%c0, %c0_0, %c0_1] : memref<2x8x32xf32, #tpu.memory_space<vmem>>, vector<2x8x32xf32>
    %1 = vector.shape_cast %0 : vector<2x8x32xf32> to vector<16x32xf32>
    %c0_2 = arith.constant 0 : index
    %c0_3 = arith.constant 0 : index
    %2 = vector.load %arg2[%c0_2, %c0_3] : memref<32x128xf32, #tpu.memory_space<vmem>>, vector<32x128xf32>
    %c0_4 = arith.constant 0 : index
    %c0_5 = arith.constant 0 : index
    %3 = vector.load %arg3[%c0_4, %c0_5] : memref<1x128xf32, #tpu.memory_space<vmem>>, vector<1x128xf32>
    %c0_6 = arith.constant 0 : index
    %c0_7 = arith.constant 0 : index
    %4 = vector.load %arg4[%c0_6, %c0_7] : memref<4x32xf32, #tpu.memory_space<vmem>>, vector<4x32xf32>
    %5 = vector.extract_strided_slice %2 {offsets = [0, 0], sizes = [32, 96], strides = [1, 1]} : vector<32x128xf32> to vector<32x96xf32>
    %cst = arith.constant dense<0.000000e+00> : vector<16x96xf32>
    %6 = tpu.matmul %1, %5, %cst {dimension_numbers = #tpu.dot_dimension_numbers<[1], [0], [0], [1], [0, 0, 1, 1], [], []>} : vector<16x32xf32>, vector<32x96xf32>, vector<16x96xf32> -> vector<16x96xf32>
    %7 = vector.extract_strided_slice %3 {offsets = [0, 0], sizes = [1, 96], strides = [1, 1]} : vector<1x128xf32> to vector<1x96xf32>
    %8 = vector.broadcast %7 : vector<1x96xf32> to vector<16x96xf32>
    %9 = arith.addf %6, %8 : vector<16x96xf32>
    %10 = vector.extract_strided_slice %9 {offsets = [0, 0], sizes = [16, 32], strides = [1, 1]} : vector<16x96xf32> to vector<16x32xf32>
    %11 = vector.shape_cast %10 : vector<16x32xf32> to vector<2x8x32xf32>
    %12 = vector.extract_strided_slice %9 {offsets = [0, 32], sizes = [16, 32], strides = [1, 1]} : vector<16x96xf32> to vector<16x32xf32>
    %13 = vector.shape_cast %12 : vector<16x32xf32> to vector<2x8x32xf32>
    %14 = vector.extract_strided_slice %9 {offsets = [0, 64], sizes = [16, 32], strides = [1, 1]} : vector<16x96xf32> to vector<16x32xf32>
    %15 = vector.shape_cast %14 : vector<16x32xf32> to vector<2x8x32xf32>
    "tpu.trace_start"() <{level = 10 : i32, message = "bqd,bkd->bqk"}> : () -> ()
    %cst_8 = arith.constant dense<0.000000e+00> : vector<2x8x8xf32>
    %16 = tpu.matmul %11, %13, %cst_8 {dimension_numbers = #tpu.dot_dimension_numbers<[2], [2], [1], [1], [0, 0, 0, 1, 1, 1], [0], [0]>} : vector<2x8x32xf32>, vector<2x8x32xf32>, vector<2x8x8xf32> -> vector<2x8x8xf32>
    "tpu.trace_stop"() : () -> ()
    %cst_9 = arith.constant 0.176776692 : f32
    %17 = vector.broadcast %cst_9 : f32 to vector<2x8x8xf32>
    %18 = arith.mulf %16, %17 : vector<2x8x8xf32>
    %c0_10 = arith.constant 0 : index
    %c0_11 = arith.constant 0 : index
    %c0_12 = arith.constant 0 : index
    %19 = vector.load %arg1[%c0_10, %c0_11, %c0_12] : memref<2x1x8xf32, #tpu.memory_space<vmem>>, vector<2x1x8xf32>
    %cst_13 = arith.constant 1.000000e+00 : f32
    %20 = vector.broadcast %cst_13 : f32 to vector<2x1x8xf32>
    %21 = arith.subf %19, %20 : vector<2x1x8xf32>
    %cst_14 = arith.constant 1.000000e+09 : f32
    %22 = vector.broadcast %cst_14 : f32 to vector<2x1x8xf32>
    %23 = arith.mulf %21, %22 : vector<2x1x8xf32>
    %24 = vector.broadcast %23 : vector<2x1x8xf32> to vector<2x8x8xf32>
    %25 = arith.addf %18, %24 : vector<2x8x8xf32>
    %cst_15 = arith.constant dense<0xFF800000> : vector<2x8xf32>
    %26 = vector.multi_reduction <maximumf>, %25, %cst_15 [2] : vector<2x8x8xf32> to vector<2x8xf32>
    %27 = vector.shape_cast %26 : vector<2x8xf32> to vector<2x8x1xf32>
    %28 = vector.broadcast %27 : vector<2x8x1xf32> to vector<2x8x8xf32>
    %29 = arith.subf %25, %28 : vector<2x8x8xf32>
    %30 = math.exp %29 : vector<2x8x8xf32>
    %cst_16 = arith.constant dense<0.000000e+00> : vector<2x8xf32>
    %31 = vector.multi_reduction <add>, %30, %cst_16 [2] : vector<2x8x8xf32> to vector<2x8xf32>
    %32 = vector.shape_cast %31 : vector<2x8xf32> to vector<2x8x1xf32>
    %33 = tpu.reciprocal %32 {approx = true} : vector<2x8x1xf32> -> vector<2x8x1xf32>
    %34 = vector.broadcast %33 : vector<2x8x1xf32> to vector<2x8x8xf32>
    %35 = arith.mulf %30, %34 : vector<2x8x8xf32>
    "tpu.trace_start"() <{level = 10 : i32, message = "bqk,bkd->bqd"}> : () -> ()
    %cst_17 = arith.constant dense<0.000000e+00> : vector<2x8x32xf32>
    %36 = tpu.matmul %35, %15, %cst_17 {dimension_numbers = #tpu.dot_dimension_numbers<[2], [1], [1], [2], [0, 0, 0, 1, 1, 2], [0], [0]>} : vector<2x8x8xf32>, vector<2x8x32xf32>, vector<2x8x32xf32> -> vector<2x8x32xf32>
    "tpu.trace_stop"() : () -> ()
    %37 = vector.shape_cast %36 : vector<2x8x32xf32> to vector<16x32xf32>
    %38 = vector.extract_strided_slice %2 {offsets = [0, 96], sizes = [32, 32], strides = [1, 1]} : vector<32x128xf32> to vector<32x32xf32>
    %cst_18 = arith.constant dense<0.000000e+00> : vector<16x32xf32>
    %39 = tpu.matmul %37, %38, %cst_18 {dimension_numbers = #tpu.dot_dimension_numbers<[1], [0], [0], [1], [0, 0, 1, 1], [], []>} : vector<16x32xf32>, vector<32x32xf32>, vector<16x32xf32> -> vector<16x32xf32>
    %40 = vector.extract_strided_slice %3 {offsets = [0, 96], sizes = [1, 32], strides = [1, 1]} : vector<1x128xf32> to vector<1x32xf32>
    %41 = vector.broadcast %40 : vector<1x32xf32> to vector<16x32xf32>
    %42 = arith.addf %39, %41 : vector<16x32xf32>
    %43 = arith.addf %1, %42 : vector<16x32xf32>
    %44 = vector.extract_strided_slice %4 {offsets = [0, 0], sizes = [1, 32], strides = [1, 1]} : vector<4x32xf32> to vector<1x32xf32>
    %45 = vector.extract_strided_slice %4 {offsets = [1, 0], sizes = [1, 32], strides = [1, 1]} : vector<4x32xf32> to vector<1x32xf32>
    %cst_19 = arith.constant dense<0.000000e+00> : vector<16xf32>
    %46 = vector.multi_reduction <add>, %43, %cst_19 [1] : vector<16x32xf32> to vector<16xf32>
    %47 = vector.shape_cast %46 : vector<16xf32> to vector<16x1xf32>
    %cst_20 = arith.constant 3.200000e+01 : f32
    %48 = vector.broadcast %cst_20 : f32 to vector<16x1xf32>
    %49 = arith.divf %47, %48 : vector<16x1xf32>
    %50 = vector.broadcast %49 : vector<16x1xf32> to vector<16x32xf32>
    %51 = arith.subf %43, %50 : vector<16x32xf32>
    %52 = arith.mulf %51, %51 : vector<16x32xf32>
    %cst_21 = arith.constant dense<0.000000e+00> : vector<16xf32>
    %53 = vector.multi_reduction <add>, %52, %cst_21 [1] : vector<16x32xf32> to vector<16xf32>
    %54 = vector.shape_cast %53 : vector<16xf32> to vector<16x1xf32>
    %cst_22 = arith.constant 3.200000e+01 : f32
    %55 = vector.broadcast %cst_22 : f32 to vector<16x1xf32>
    %56 = arith.divf %54, %55 : vector<16x1xf32>
    %57 = vector.broadcast %49 : vector<16x1xf32> to vector<16x32xf32>
    %58 = arith.subf %43, %57 : vector<16x32xf32>
    %cst_23 = arith.constant 9.99999974E-6 : f32
    %59 = vector.broadcast %cst_23 : f32 to vector<16x1xf32>
    %60 = arith.addf %56, %59 : vector<16x1xf32>
    %61 = math.rsqrt %60 : vector<16x1xf32>
    %62 = vector.broadcast %61 : vector<16x1xf32> to vector<16x32xf32>
    %63 = arith.mulf %58, %62 : vector<16x32xf32>
    %64 = vector.broadcast %44 : vector<1x32xf32> to vector<16x32xf32>
    %65 = arith.mulf %63, %64 : vector<16x32xf32>
    %66 = vector.broadcast %45 : vector<1x32xf32> to vector<16x32xf32>
    %67 = arith.addf %65, %66 : vector<16x32xf32>
    %c0_24 = arith.constant 0 : index
    %c0_25 = arith.constant 0 : index
    %68 = vector.load %arg5[%c0_24, %c0_25] : memref<32x128xf32, #tpu.memory_space<vmem>>, vector<32x128xf32>
    %cst_26 = arith.constant dense<0.000000e+00> : vector<16x128xf32>
    %69 = tpu.matmul %67, %68, %cst_26 {dimension_numbers = #tpu.dot_dimension_numbers<[1], [0], [0], [1], [0, 0, 1, 1], [], []>} : vector<16x32xf32>, vector<32x128xf32>, vector<16x128xf32> -> vector<16x128xf32>
    %c0_27 = arith.constant 0 : index
    %c0_28 = arith.constant 0 : index
    %70 = vector.load %arg6[%c0_27, %c0_28] : memref<1x128xf32, #tpu.memory_space<vmem>>, vector<1x128xf32>
    %71 = vector.broadcast %70 : vector<1x128xf32> to vector<16x128xf32>
    %72 = arith.addf %69, %71 : vector<16x128xf32>
    %cst_29 = arith.constant 5.000000e-01 : f32
    %73 = vector.broadcast %cst_29 : f32 to vector<16x128xf32>
    %74 = arith.mulf %73, %72 : vector<16x128xf32>
    %cst_30 = arith.constant 4.471500e-02 : f32
    %75 = vector.broadcast %cst_30 : f32 to vector<16x128xf32>
    %76 = arith.mulf %75, %72 : vector<16x128xf32>
    %77 = arith.mulf %76, %72 : vector<16x128xf32>
    %78 = arith.mulf %77, %72 : vector<16x128xf32>
    %79 = arith.addf %72, %78 : vector<16x128xf32>
    %cst_31 = arith.constant 0.797884583 : f32
    %80 = vector.broadcast %cst_31 : f32 to vector<16x128xf32>
    %81 = arith.mulf %80, %79 : vector<16x128xf32>
    %82 = math.tanh %81 : vector<16x128xf32>
    %cst_32 = arith.constant 1.000000e+00 : f32
    %83 = vector.broadcast %cst_32 : f32 to vector<16x128xf32>
    %84 = arith.addf %83, %82 : vector<16x128xf32>
    %85 = arith.mulf %74, %84 : vector<16x128xf32>
    %c0_33 = arith.constant 0 : index
    %c0_34 = arith.constant 0 : index
    %86 = vector.load %arg7[%c0_33, %c0_34] : memref<128x32xf32, #tpu.memory_space<vmem>>, vector<128x32xf32>
    %cst_35 = arith.constant dense<0.000000e+00> : vector<16x32xf32>
    %87 = tpu.matmul %85, %86, %cst_35 {dimension_numbers = #tpu.dot_dimension_numbers<[1], [0], [0], [1], [0, 0, 1, 1], [], []>} : vector<16x128xf32>, vector<128x32xf32>, vector<16x32xf32> -> vector<16x32xf32>
    %c0_36 = arith.constant 0 : index
    %c0_37 = arith.constant 0 : index
    %88 = vector.load %arg8[%c0_36, %c0_37] : memref<1x32xf32, #tpu.memory_space<vmem>>, vector<1x32xf32>
    %89 = vector.broadcast %88 : vector<1x32xf32> to vector<16x32xf32>
    %90 = arith.addf %87, %89 : vector<16x32xf32>
    %91 = arith.addf %67, %90 : vector<16x32xf32>
    %92 = vector.extract_strided_slice %4 {offsets = [2, 0], sizes = [1, 32], strides = [1, 1]} : vector<4x32xf32> to vector<1x32xf32>
    %93 = vector.extract_strided_slice %4 {offsets = [3, 0], sizes = [1, 32], strides = [1, 1]} : vector<4x32xf32> to vector<1x32xf32>
    %cst_38 = arith.constant dense<0.000000e+00> : vector<16xf32>
    %94 = vector.multi_reduction <add>, %91, %cst_38 [1] : vector<16x32xf32> to vector<16xf32>
    %95 = vector.shape_cast %94 : vector<16xf32> to vector<16x1xf32>
    %cst_39 = arith.constant 3.200000e+01 : f32
    %96 = vector.broadcast %cst_39 : f32 to vector<16x1xf32>
    %97 = arith.divf %95, %96 : vector<16x1xf32>
    %98 = vector.broadcast %97 : vector<16x1xf32> to vector<16x32xf32>
    %99 = arith.subf %91, %98 : vector<16x32xf32>
    %100 = arith.mulf %99, %99 : vector<16x32xf32>
    %cst_40 = arith.constant dense<0.000000e+00> : vector<16xf32>
    %101 = vector.multi_reduction <add>, %100, %cst_40 [1] : vector<16x32xf32> to vector<16xf32>
    %102 = vector.shape_cast %101 : vector<16xf32> to vector<16x1xf32>
    %cst_41 = arith.constant 3.200000e+01 : f32
    %103 = vector.broadcast %cst_41 : f32 to vector<16x1xf32>
    %104 = arith.divf %102, %103 : vector<16x1xf32>
    %105 = vector.broadcast %97 : vector<16x1xf32> to vector<16x32xf32>
    %106 = arith.subf %91, %105 : vector<16x32xf32>
    %cst_42 = arith.constant 9.99999974E-6 : f32
    %107 = vector.broadcast %cst_42 : f32 to vector<16x1xf32>
    %108 = arith.addf %104, %107 : vector<16x1xf32>
    %109 = math.rsqrt %108 : vector<16x1xf32>
    %110 = vector.broadcast %109 : vector<16x1xf32> to vector<16x32xf32>
    %111 = arith.mulf %106, %110 : vector<16x32xf32>
    %112 = vector.broadcast %92 : vector<1x32xf32> to vector<16x32xf32>
    %113 = arith.mulf %111, %112 : vector<16x32xf32>
    %114 = vector.broadcast %93 : vector<1x32xf32> to vector<16x32xf32>
    %115 = arith.addf %113, %114 : vector<16x32xf32>
    %c0_43 = arith.constant 0 : index
    %c0_44 = arith.constant 0 : index
    %116 = vector.load %arg9[%c0_43, %c0_44] : memref<32x256xf32, #tpu.memory_space<vmem>>, vector<32x256xf32>
    %cst_45 = arith.constant dense<0.000000e+00> : vector<16x256xf32>
    %117 = tpu.matmul %115, %116, %cst_45 {dimension_numbers = #tpu.dot_dimension_numbers<[1], [0], [0], [1], [0, 0, 1, 1], [], []>} : vector<16x32xf32>, vector<32x256xf32>, vector<16x256xf32> -> vector<16x256xf32>
    %c0_46 = arith.constant 0 : index
    %c0_47 = arith.constant 0 : index
    %118 = vector.load %arg10[%c0_46, %c0_47] : memref<1x256xf32, #tpu.memory_space<vmem>>, vector<1x256xf32>
    %119 = vector.broadcast %118 : vector<1x256xf32> to vector<16x256xf32>
    %120 = arith.addf %117, %119 : vector<16x256xf32>
    %121 = vector.shape_cast %120 : vector<16x256xf32> to vector<2x8x256xf32>
    %122 = vector.extract_strided_slice %121 {offsets = [0, 0, 0], sizes = [2, 8, 128], strides = [1, 1, 1]} : vector<2x8x256xf32> to vector<2x8x128xf32>
    %123 = vector.extract_strided_slice %121 {offsets = [0, 0, 128], sizes = [2, 8, 128], strides = [1, 1, 1]} : vector<2x8x256xf32> to vector<2x8x128xf32>
    %124 = tpu.iota {dimensions = array<i32: 0>} : vector<4x64xi32>
    %125 = tpu.iota {dimensions = array<i32: 1>} : vector<4x64xi32>
    %c2_i32 = arith.constant 2 : i32
    %126 = vector.broadcast %c2_i32 : i32 to vector<4x64xi32>
    %127 = arith.cmpi slt, %124, %126 : vector<4x64xi32>
    %c32_i32 = arith.constant 32 : i32
    %128 = vector.broadcast %c32_i32 : i32 to vector<4x64xi32>
    %129 = arith.cmpi slt, %125, %128 : vector<4x64xi32>
    %130 = arith.xori %127, %129 : vector<4x64xi1>
    %cst_48 = arith.constant dense<true> : vector<4x64xi1>
    %131 = arith.xori %130, %cst_48 : vector<4x64xi1>
    %cst_49 = arith.constant 1.000000e+00 : f32
    %cst_50 = arith.constant 0.000000e+00 : f32
    %132 = vector.broadcast %cst_49 : f32 to vector<4x64xf32>
    %133 = vector.broadcast %cst_50 : f32 to vector<4x64xf32>
    %134 = arith.select %131, %132, %133 : vector<4x64xi1>, vector<4x64xf32>
    %c0_51 = arith.constant 0 : index
    %c0_52 = arith.constant 0 : index
    %135 = vector.load %arg11[%c0_51, %c0_52] : memref<64x128xf32, #tpu.memory_space<vmem>>, vector<64x128xf32>
    %cst_53 = arith.constant 0.000000e+00 : f32
    %136 = vector.broadcast %cst_53 : f32 to vector<4x64xf32>
    %cst_54 = arith.constant 0.000000e+00 : f32
    %137 = vector.broadcast %cst_54 : f32 to vector<4x32xf32>
    %138 = vector.extract_strided_slice %122 {offsets = [0, 0, 0], sizes = [2, 1, 128], strides = [1, 1, 1]} : vector<2x8x128xf32> to vector<2x1x128xf32>
    %139 = vector.shape_cast %138 : vector<2x1x128xf32> to vector<2x128xf32>
    %140 = vector.extract_strided_slice %123 {offsets = [0, 7, 0], sizes = [2, 1, 128], strides = [1, 1, 1]} : vector<2x8x128xf32> to vector<2x1x128xf32>
    %141 = vector.shape_cast %140 : vector<2x1x128xf32> to vector<2x128xf32>
    %142 = tpu.concatenate %139, %141 in 0 : vector<2x128xf32>, vector<2x128xf32> -> vector<4x128xf32>
    %cst_55 = arith.constant dense<0.000000e+00> : vector<4x128xf32>
    %143 = tpu.matmul %136, %135, %cst_55 {dimension_numbers = #tpu.dot_dimension_numbers<[1], [0], [0], [1], [0, 0, 1, 1], [], []>} : vector<4x64xf32>, vector<64x128xf32>, vector<4x128xf32> -> vector<4x128xf32>
    %144 = arith.addf %142, %143 : vector<4x128xf32>
    %145 = vector.extract_strided_slice %144 {offsets = [0, 0], sizes = [4, 32], strides = [1, 1]} : vector<4x128xf32> to vector<4x32xf32>
    %146 = arith.negf %145 : vector<4x32xf32>
    %147 = math.exp %146 : vector<4x32xf32>
    %cst_56 = arith.constant 1.000000e+00 : f32
    %148 = vector.broadcast %cst_56 : f32 to vector<4x32xf32>
    %149 = arith.addf %148, %147 : vector<4x32xf32>
    %150 = arith.divf %148, %149 : vector<4x32xf32>
    %151 = vector.extract_strided_slice %144 {offsets = [0, 32], sizes = [4, 32], strides = [1, 1]} : vector<4x128xf32> to vector<4x32xf32>
    %152 = arith.negf %151 : vector<4x32xf32>
    %153 = math.exp %152 : vector<4x32xf32>
    %cst_57 = arith.constant 1.000000e+00 : f32
    %154 = vector.broadcast %cst_57 : f32 to vector<4x32xf32>
    %155 = arith.addf %154, %153 : vector<4x32xf32>
    %156 = arith.divf %154, %155 : vector<4x32xf32>
    %157 = vector.extract_strided_slice %144 {offsets = [0, 64], sizes = [4, 32], strides = [1, 1]} : vector<4x128xf32> to vector<4x32xf32>
    %158 = math.tanh %157 : vector<4x32xf32>
    %159 = vector.extract_strided_slice %144 {offsets = [0, 96], sizes = [4, 32], strides = [1, 1]} : vector<4x128xf32> to vector<4x32xf32>
    %160 = arith.negf %159 : vector<4x32xf32>
    %161 = math.exp %160 : vector<4x32xf32>
    %cst_58 = arith.constant 1.000000e+00 : f32
    %162 = vector.broadcast %cst_58 : f32 to vector<4x32xf32>
    %163 = arith.addf %162, %161 : vector<4x32xf32>
    %164 = arith.divf %162, %163 : vector<4x32xf32>
    %165 = arith.mulf %156, %137 : vector<4x32xf32>
    %166 = arith.mulf %150, %158 : vector<4x32xf32>
    %167 = arith.addf %165, %166 : vector<4x32xf32>
    %168 = math.tanh %167 : vector<4x32xf32>
    %169 = arith.mulf %164, %168 : vector<4x32xf32>
    %170 = vector.extract_strided_slice %169 {offsets = [0, 0], sizes = [2, 32], strides = [1, 1]} : vector<4x32xf32> to vector<2x32xf32>
    %171 = vector.extract_strided_slice %169 {offsets = [2, 0], sizes = [2, 32], strides = [1, 1]} : vector<4x32xf32> to vector<2x32xf32>
    %172 = tpu.concatenate %169, %169 in 1 : vector<4x32xf32>, vector<4x32xf32> -> vector<4x64xf32>
    %173 = arith.mulf %172, %134 : vector<4x64xf32>
    %174 = vector.extract_strided_slice %122 {offsets = [0, 1, 0], sizes = [2, 1, 128], strides = [1, 1, 1]} : vector<2x8x128xf32> to vector<2x1x128xf32>
    %175 = vector.shape_cast %174 : vector<2x1x128xf32> to vector<2x128xf32>
    %176 = vector.extract_strided_slice %123 {offsets = [0, 6, 0], sizes = [2, 1, 128], strides = [1, 1, 1]} : vector<2x8x128xf32> to vector<2x1x128xf32>
    %177 = vector.shape_cast %176 : vector<2x1x128xf32> to vector<2x128xf32>
    %178 = tpu.concatenate %175, %177 in 0 : vector<2x128xf32>, vector<2x128xf32> -> vector<4x128xf32>
    %cst_59 = arith.constant dense<0.000000e+00> : vector<4x128xf32>
    %179 = tpu.matmul %173, %135, %cst_59 {dimension_numbers = #tpu.dot_dimension_numbers<[1], [0], [0], [1], [0, 0, 1, 1], [], []>} : vector<4x64xf32>, vector<64x128xf32>, vector<4x128xf32> -> vector<4x128xf32>
    %180 = arith.addf %178, %179 : vector<4x128xf32>
    %181 = vector.extract_strided_slice %180 {offsets = [0, 0], sizes = [4, 32], strides = [1, 1]} : vector<4x128xf32> to vector<4x32xf32>
    %182 = arith.negf %181 : vector<4x32xf32>
    %183 = math.exp %182 : vector<4x32xf32>
    %cst_60 = arith.constant 1.000000e+00 : f32
    %184 = vector.broadcast %cst_60 : f32 to vector<4x32xf32>
    %185 = arith.addf %184, %183 : vector<4x32xf32>
    %186 = arith.divf %184, %185 : vector<4x32xf32>
    %187 = vector.extract_strided_slice %180 {offsets = [0, 32], sizes = [4, 32], strides = [1, 1]} : vector<4x128xf32> to vector<4x32xf32>
    %188 = arith.negf %187 : vector<4x32xf32>
    %189 = math.exp %188 : vector<4x32xf32>
    %cst_61 = arith.constant 1.000000e+00 : f32
    %190 = vector.broadcast %cst_61 : f32 to vector<4x32xf32>
    %191 = arith.addf %190, %189 : vector<4x32xf32>
    %192 = arith.divf %190, %191 : vector<4x32xf32>
    %193 = vector.extract_strided_slice %180 {offsets = [0, 64], sizes = [4, 32], strides = [1, 1]} : vector<4x128xf32> to vector<4x32xf32>
    %194 = math.tanh %193 : vector<4x32xf32>
    %195 = vector.extract_strided_slice %180 {offsets = [0, 96], sizes = [4, 32], strides = [1, 1]} : vector<4x128xf32> to vector<4x32xf32>
    %196 = arith.negf %195 : vector<4x32xf32>
    %197 = math.exp %196 : vector<4x32xf32>
    %cst_62 = arith.constant 1.000000e+00 : f32
    %198 = vector.broadcast %cst_62 : f32 to vector<4x32xf32>
    %199 = arith.addf %198, %197 : vector<4x32xf32>
    %200 = arith.divf %198, %199 : vector<4x32xf32>
    %201 = arith.mulf %192, %167 : vector<4x32xf32>
    %202 = arith.mulf %186, %194 : vector<4x32xf32>
    %203 = arith.addf %201, %202 : vector<4x32xf32>
    %204 = math.tanh %203 : vector<4x32xf32>
    %205 = arith.mulf %200, %204 : vector<4x32xf32>
    %206 = vector.extract_strided_slice %205 {offsets = [0, 0], sizes = [2, 32], strides = [1, 1]} : vector<4x32xf32> to vector<2x32xf32>
    %207 = vector.extract_strided_slice %205 {offsets = [2, 0], sizes = [2, 32], strides = [1, 1]} : vector<4x32xf32> to vector<2x32xf32>
    %208 = tpu.concatenate %205, %205 in 1 : vector<4x32xf32>, vector<4x32xf32> -> vector<4x64xf32>
    %209 = arith.mulf %208, %134 : vector<4x64xf32>
    %210 = vector.extract_strided_slice %122 {offsets = [0, 2, 0], sizes = [2, 1, 128], strides = [1, 1, 1]} : vector<2x8x128xf32> to vector<2x1x128xf32>
    %211 = vector.shape_cast %210 : vector<2x1x128xf32> to vector<2x128xf32>
    %212 = vector.extract_strided_slice %123 {offsets = [0, 5, 0], sizes = [2, 1, 128], strides = [1, 1, 1]} : vector<2x8x128xf32> to vector<2x1x128xf32>
    %213 = vector.shape_cast %212 : vector<2x1x128xf32> to vector<2x128xf32>
    %214 = tpu.concatenate %211, %213 in 0 : vector<2x128xf32>, vector<2x128xf32> -> vector<4x128xf32>
    %cst_63 = arith.constant dense<0.000000e+00> : vector<4x128xf32>
    %215 = tpu.matmul %209, %135, %cst_63 {dimension_numbers = #tpu.dot_dimension_numbers<[1], [0], [0], [1], [0, 0, 1, 1], [], []>} : vector<4x64xf32>, vector<64x128xf32>, vector<4x128xf32> -> vector<4x128xf32>
    %216 = arith.addf %214, %215 : vector<4x128xf32>
    %217 = vector.extract_strided_slice %216 {offsets = [0, 0], sizes = [4, 32], strides = [1, 1]} : vector<4x128xf32> to vector<4x32xf32>
    %218 = arith.negf %217 : vector<4x32xf32>
    %219 = math.exp %218 : vector<4x32xf32>
    %cst_64 = arith.constant 1.000000e+00 : f32
    %220 = vector.broadcast %cst_64 : f32 to vector<4x32xf32>
    %221 = arith.addf %220, %219 : vector<4x32xf32>
    %222 = arith.divf %220, %221 : vector<4x32xf32>
    %223 = vector.extract_strided_slice %216 {offsets = [0, 32], sizes = [4, 32], strides = [1, 1]} : vector<4x128xf32> to vector<4x32xf32>
    %224 = arith.negf %223 : vector<4x32xf32>
    %225 = math.exp %224 : vector<4x32xf32>
    %cst_65 = arith.constant 1.000000e+00 : f32
    %226 = vector.broadcast %cst_65 : f32 to vector<4x32xf32>
    %227 = arith.addf %226, %225 : vector<4x32xf32>
    %228 = arith.divf %226, %227 : vector<4x32xf32>
    %229 = vector.extract_strided_slice %216 {offsets = [0, 64], sizes = [4, 32], strides = [1, 1]} : vector<4x128xf32> to vector<4x32xf32>
    %230 = math.tanh %229 : vector<4x32xf32>
    %231 = vector.extract_strided_slice %216 {offsets = [0, 96], sizes = [4, 32], strides = [1, 1]} : vector<4x128xf32> to vector<4x32xf32>
    %232 = arith.negf %231 : vector<4x32xf32>
    %233 = math.exp %232 : vector<4x32xf32>
    %cst_66 = arith.constant 1.000000e+00 : f32
    %234 = vector.broadcast %cst_66 : f32 to vector<4x32xf32>
    %235 = arith.addf %234, %233 : vector<4x32xf32>
    %236 = arith.divf %234, %235 : vector<4x32xf32>
    %237 = arith.mulf %228, %203 : vector<4x32xf32>
    %238 = arith.mulf %222, %230 : vector<4x32xf32>
    %239 = arith.addf %237, %238 : vector<4x32xf32>
    %240 = math.tanh %239 : vector<4x32xf32>
    %241 = arith.mulf %236, %240 : vector<4x32xf32>
    %242 = vector.extract_strided_slice %241 {offsets = [0, 0], sizes = [2, 32], strides = [1, 1]} : vector<4x32xf32> to vector<2x32xf32>
    %243 = vector.extract_strided_slice %241 {offsets = [2, 0], sizes = [2, 32], strides = [1, 1]} : vector<4x32xf32> to vector<2x32xf32>
    %244 = tpu.concatenate %241, %241 in 1 : vector<4x32xf32>, vector<4x32xf32> -> vector<4x64xf32>
    %245 = arith.mulf %244, %134 : vector<4x64xf32>
    %246 = vector.extract_strided_slice %122 {offsets = [0, 3, 0], sizes = [2, 1, 128], strides = [1, 1, 1]} : vector<2x8x128xf32> to vector<2x1x128xf32>
    %247 = vector.shape_cast %246 : vector<2x1x128xf32> to vector<2x128xf32>
    %248 = vector.extract_strided_slice %123 {offsets = [0, 4, 0], sizes = [2, 1, 128], strides = [1, 1, 1]} : vector<2x8x128xf32> to vector<2x1x128xf32>
    %249 = vector.shape_cast %248 : vector<2x1x128xf32> to vector<2x128xf32>
    %250 = tpu.concatenate %247, %249 in 0 : vector<2x128xf32>, vector<2x128xf32> -> vector<4x128xf32>
    %cst_67 = arith.constant dense<0.000000e+00> : vector<4x128xf32>
    %251 = tpu.matmul %245, %135, %cst_67 {dimension_numbers = #tpu.dot_dimension_numbers<[1], [0], [0], [1], [0, 0, 1, 1], [], []>} : vector<4x64xf32>, vector<64x128xf32>, vector<4x128xf32> -> vector<4x128xf32>
    %252 = arith.addf %250, %251 : vector<4x128xf32>
    %253 = vector.extract_strided_slice %252 {offsets = [0, 0], sizes = [4, 32], strides = [1, 1]} : vector<4x128xf32> to vector<4x32xf32>
    %254 = arith.negf %253 : vector<4x32xf32>
    %255 = math.exp %254 : vector<4x32xf32>
    %cst_68 = arith.constant 1.000000e+00 : f32
    %256 = vector.broadcast %cst_68 : f32 to vector<4x32xf32>
    %257 = arith.addf %256, %255 : vector<4x32xf32>
    %258 = arith.divf %256, %257 : vector<4x32xf32>
    %259 = vector.extract_strided_slice %252 {offsets = [0, 32], sizes = [4, 32], strides = [1, 1]} : vector<4x128xf32> to vector<4x32xf32>
    %260 = arith.negf %259 : vector<4x32xf32>
    %261 = math.exp %260 : vector<4x32xf32>
    %cst_69 = arith.constant 1.000000e+00 : f32
    %262 = vector.broadcast %cst_69 : f32 to vector<4x32xf32>
    %263 = arith.addf %262, %261 : vector<4x32xf32>
    %264 = arith.divf %262, %263 : vector<4x32xf32>
    %265 = vector.extract_strided_slice %252 {offsets = [0, 64], sizes = [4, 32], strides = [1, 1]} : vector<4x128xf32> to vector<4x32xf32>
    %266 = math.tanh %265 : vector<4x32xf32>
    %267 = vector.extract_strided_slice %252 {offsets = [0, 96], sizes = [4, 32], strides = [1, 1]} : vector<4x128xf32> to vector<4x32xf32>
    %268 = arith.negf %267 : vector<4x32xf32>
    %269 = math.exp %268 : vector<4x32xf32>
    %cst_70 = arith.constant 1.000000e+00 : f32
    %270 = vector.broadcast %cst_70 : f32 to vector<4x32xf32>
    %271 = arith.addf %270, %269 : vector<4x32xf32>
    %272 = arith.divf %270, %271 : vector<4x32xf32>
    %273 = arith.mulf %264, %239 : vector<4x32xf32>
    %274 = arith.mulf %258, %266 : vector<4x32xf32>
    %275 = arith.addf %273, %274 : vector<4x32xf32>
    %276 = math.tanh %275 : vector<4x32xf32>
    %277 = arith.mulf %272, %276 : vector<4x32xf32>
    %278 = vector.extract_strided_slice %277 {offsets = [0, 0], sizes = [2, 32], strides = [1, 1]} : vector<4x32xf32> to vector<2x32xf32>
    %279 = vector.extract_strided_slice %277 {offsets = [2, 0], sizes = [2, 32], strides = [1, 1]} : vector<4x32xf32> to vector<2x32xf32>
    %280 = tpu.concatenate %277, %277 in 1 : vector<4x32xf32>, vector<4x32xf32> -> vector<4x64xf32>
    %281 = arith.mulf %280, %134 : vector<4x64xf32>
    %282 = vector.extract_strided_slice %122 {offsets = [0, 4, 0], sizes = [2, 1, 128], strides = [1, 1, 1]} : vector<2x8x128xf32> to vector<2x1x128xf32>
    %283 = vector.shape_cast %282 : vector<2x1x128xf32> to vector<2x128xf32>
    %284 = vector.extract_strided_slice %123 {offsets = [0, 3, 0], sizes = [2, 1, 128], strides = [1, 1, 1]} : vector<2x8x128xf32> to vector<2x1x128xf32>
    %285 = vector.shape_cast %284 : vector<2x1x128xf32> to vector<2x128xf32>
    %286 = tpu.concatenate %283, %285 in 0 : vector<2x128xf32>, vector<2x128xf32> -> vector<4x128xf32>
    %cst_71 = arith.constant dense<0.000000e+00> : vector<4x128xf32>
    %287 = tpu.matmul %281, %135, %cst_71 {dimension_numbers = #tpu.dot_dimension_numbers<[1], [0], [0], [1], [0, 0, 1, 1], [], []>} : vector<4x64xf32>, vector<64x128xf32>, vector<4x128xf32> -> vector<4x128xf32>
    %288 = arith.addf %286, %287 : vector<4x128xf32>
    %289 = vector.extract_strided_slice %288 {offsets = [0, 0], sizes = [4, 32], strides = [1, 1]} : vector<4x128xf32> to vector<4x32xf32>
    %290 = arith.negf %289 : vector<4x32xf32>
    %291 = math.exp %290 : vector<4x32xf32>
    %cst_72 = arith.constant 1.000000e+00 : f32
    %292 = vector.broadcast %cst_72 : f32 to vector<4x32xf32>
    %293 = arith.addf %292, %291 : vector<4x32xf32>
    %294 = arith.divf %292, %293 : vector<4x32xf32>
    %295 = vector.extract_strided_slice %288 {offsets = [0, 32], sizes = [4, 32], strides = [1, 1]} : vector<4x128xf32> to vector<4x32xf32>
    %296 = arith.negf %295 : vector<4x32xf32>
    %297 = math.exp %296 : vector<4x32xf32>
    %cst_73 = arith.constant 1.000000e+00 : f32
    %298 = vector.broadcast %cst_73 : f32 to vector<4x32xf32>
    %299 = arith.addf %298, %297 : vector<4x32xf32>
    %300 = arith.divf %298, %299 : vector<4x32xf32>
    %301 = vector.extract_strided_slice %288 {offsets = [0, 64], sizes = [4, 32], strides = [1, 1]} : vector<4x128xf32> to vector<4x32xf32>
    %302 = math.tanh %301 : vector<4x32xf32>
    %303 = vector.extract_strided_slice %288 {offsets = [0, 96], sizes = [4, 32], strides = [1, 1]} : vector<4x128xf32> to vector<4x32xf32>
    %304 = arith.negf %303 : vector<4x32xf32>
    %305 = math.exp %304 : vector<4x32xf32>
    %cst_74 = arith.constant 1.000000e+00 : f32
    %306 = vector.broadcast %cst_74 : f32 to vector<4x32xf32>
    %307 = arith.addf %306, %305 : vector<4x32xf32>
    %308 = arith.divf %306, %307 : vector<4x32xf32>
    %309 = arith.mulf %300, %275 : vector<4x32xf32>
    %310 = arith.mulf %294, %302 : vector<4x32xf32>
    %311 = arith.addf %309, %310 : vector<4x32xf32>
    %312 = math.tanh %311 : vector<4x32xf32>
    %313 = arith.mulf %308, %312 : vector<4x32xf32>
    %314 = vector.extract_strided_slice %313 {offsets = [0, 0], sizes = [2, 32], strides = [1, 1]} : vector<4x32xf32> to vector<2x32xf32>
    %315 = vector.extract_strided_slice %313 {offsets = [2, 0], sizes = [2, 32], strides = [1, 1]} : vector<4x32xf32> to vector<2x32xf32>
    %316 = tpu.concatenate %313, %313 in 1 : vector<4x32xf32>, vector<4x32xf32> -> vector<4x64xf32>
    %317 = arith.mulf %316, %134 : vector<4x64xf32>
    %318 = vector.extract_strided_slice %122 {offsets = [0, 5, 0], sizes = [2, 1, 128], strides = [1, 1, 1]} : vector<2x8x128xf32> to vector<2x1x128xf32>
    %319 = vector.shape_cast %318 : vector<2x1x128xf32> to vector<2x128xf32>
    %320 = vector.extract_strided_slice %123 {offsets = [0, 2, 0], sizes = [2, 1, 128], strides = [1, 1, 1]} : vector<2x8x128xf32> to vector<2x1x128xf32>
    %321 = vector.shape_cast %320 : vector<2x1x128xf32> to vector<2x128xf32>
    %322 = tpu.concatenate %319, %321 in 0 : vector<2x128xf32>, vector<2x128xf32> -> vector<4x128xf32>
    %cst_75 = arith.constant dense<0.000000e+00> : vector<4x128xf32>
    %323 = tpu.matmul %317, %135, %cst_75 {dimension_numbers = #tpu.dot_dimension_numbers<[1], [0], [0], [1], [0, 0, 1, 1], [], []>} : vector<4x64xf32>, vector<64x128xf32>, vector<4x128xf32> -> vector<4x128xf32>
    %324 = arith.addf %322, %323 : vector<4x128xf32>
    %325 = vector.extract_strided_slice %324 {offsets = [0, 0], sizes = [4, 32], strides = [1, 1]} : vector<4x128xf32> to vector<4x32xf32>
    %326 = arith.negf %325 : vector<4x32xf32>
    %327 = math.exp %326 : vector<4x32xf32>
    %cst_76 = arith.constant 1.000000e+00 : f32
    %328 = vector.broadcast %cst_76 : f32 to vector<4x32xf32>
    %329 = arith.addf %328, %327 : vector<4x32xf32>
    %330 = arith.divf %328, %329 : vector<4x32xf32>
    %331 = vector.extract_strided_slice %324 {offsets = [0, 32], sizes = [4, 32], strides = [1, 1]} : vector<4x128xf32> to vector<4x32xf32>
    %332 = arith.negf %331 : vector<4x32xf32>
    %333 = math.exp %332 : vector<4x32xf32>
    %cst_77 = arith.constant 1.000000e+00 : f32
    %334 = vector.broadcast %cst_77 : f32 to vector<4x32xf32>
    %335 = arith.addf %334, %333 : vector<4x32xf32>
    %336 = arith.divf %334, %335 : vector<4x32xf32>
    %337 = vector.extract_strided_slice %324 {offsets = [0, 64], sizes = [4, 32], strides = [1, 1]} : vector<4x128xf32> to vector<4x32xf32>
    %338 = math.tanh %337 : vector<4x32xf32>
    %339 = vector.extract_strided_slice %324 {offsets = [0, 96], sizes = [4, 32], strides = [1, 1]} : vector<4x128xf32> to vector<4x32xf32>
    %340 = arith.negf %339 : vector<4x32xf32>
    %341 = math.exp %340 : vector<4x32xf32>
    %cst_78 = arith.constant 1.000000e+00 : f32
    %342 = vector.broadcast %cst_78 : f32 to vector<4x32xf32>
    %343 = arith.addf %342, %341 : vector<4x32xf32>
    %344 = arith.divf %342, %343 : vector<4x32xf32>
    %345 = arith.mulf %336, %311 : vector<4x32xf32>
    %346 = arith.mulf %330, %338 : vector<4x32xf32>
    %347 = arith.addf %345, %346 : vector<4x32xf32>
    %348 = math.tanh %347 : vector<4x32xf32>
    %349 = arith.mulf %344, %348 : vector<4x32xf32>
    %350 = vector.extract_strided_slice %349 {offsets = [0, 0], sizes = [2, 32], strides = [1, 1]} : vector<4x32xf32> to vector<2x32xf32>
    %351 = vector.extract_strided_slice %349 {offsets = [2, 0], sizes = [2, 32], strides = [1, 1]} : vector<4x32xf32> to vector<2x32xf32>
    %352 = tpu.concatenate %349, %349 in 1 : vector<4x32xf32>, vector<4x32xf32> -> vector<4x64xf32>
    %353 = arith.mulf %352, %134 : vector<4x64xf32>
    %354 = vector.extract_strided_slice %122 {offsets = [0, 6, 0], sizes = [2, 1, 128], strides = [1, 1, 1]} : vector<2x8x128xf32> to vector<2x1x128xf32>
    %355 = vector.shape_cast %354 : vector<2x1x128xf32> to vector<2x128xf32>
    %356 = vector.extract_strided_slice %123 {offsets = [0, 1, 0], sizes = [2, 1, 128], strides = [1, 1, 1]} : vector<2x8x128xf32> to vector<2x1x128xf32>
    %357 = vector.shape_cast %356 : vector<2x1x128xf32> to vector<2x128xf32>
    %358 = tpu.concatenate %355, %357 in 0 : vector<2x128xf32>, vector<2x128xf32> -> vector<4x128xf32>
    %cst_79 = arith.constant dense<0.000000e+00> : vector<4x128xf32>
    %359 = tpu.matmul %353, %135, %cst_79 {dimension_numbers = #tpu.dot_dimension_numbers<[1], [0], [0], [1], [0, 0, 1, 1], [], []>} : vector<4x64xf32>, vector<64x128xf32>, vector<4x128xf32> -> vector<4x128xf32>
    %360 = arith.addf %358, %359 : vector<4x128xf32>
    %361 = vector.extract_strided_slice %360 {offsets = [0, 0], sizes = [4, 32], strides = [1, 1]} : vector<4x128xf32> to vector<4x32xf32>
    %362 = arith.negf %361 : vector<4x32xf32>
    %363 = math.exp %362 : vector<4x32xf32>
    %cst_80 = arith.constant 1.000000e+00 : f32
    %364 = vector.broadcast %cst_80 : f32 to vector<4x32xf32>
    %365 = arith.addf %364, %363 : vector<4x32xf32>
    %366 = arith.divf %364, %365 : vector<4x32xf32>
    %367 = vector.extract_strided_slice %360 {offsets = [0, 32], sizes = [4, 32], strides = [1, 1]} : vector<4x128xf32> to vector<4x32xf32>
    %368 = arith.negf %367 : vector<4x32xf32>
    %369 = math.exp %368 : vector<4x32xf32>
    %cst_81 = arith.constant 1.000000e+00 : f32
    %370 = vector.broadcast %cst_81 : f32 to vector<4x32xf32>
    %371 = arith.addf %370, %369 : vector<4x32xf32>
    %372 = arith.divf %370, %371 : vector<4x32xf32>
    %373 = vector.extract_strided_slice %360 {offsets = [0, 64], sizes = [4, 32], strides = [1, 1]} : vector<4x128xf32> to vector<4x32xf32>
    %374 = math.tanh %373 : vector<4x32xf32>
    %375 = vector.extract_strided_slice %360 {offsets = [0, 96], sizes = [4, 32], strides = [1, 1]} : vector<4x128xf32> to vector<4x32xf32>
    %376 = arith.negf %375 : vector<4x32xf32>
    %377 = math.exp %376 : vector<4x32xf32>
    %cst_82 = arith.constant 1.000000e+00 : f32
    %378 = vector.broadcast %cst_82 : f32 to vector<4x32xf32>
    %379 = arith.addf %378, %377 : vector<4x32xf32>
    %380 = arith.divf %378, %379 : vector<4x32xf32>
    %381 = arith.mulf %372, %347 : vector<4x32xf32>
    %382 = arith.mulf %366, %374 : vector<4x32xf32>
    %383 = arith.addf %381, %382 : vector<4x32xf32>
    %384 = math.tanh %383 : vector<4x32xf32>
    %385 = arith.mulf %380, %384 : vector<4x32xf32>
    %386 = vector.extract_strided_slice %385 {offsets = [0, 0], sizes = [2, 32], strides = [1, 1]} : vector<4x32xf32> to vector<2x32xf32>
    %387 = vector.extract_strided_slice %385 {offsets = [2, 0], sizes = [2, 32], strides = [1, 1]} : vector<4x32xf32> to vector<2x32xf32>
    %388 = tpu.concatenate %385, %385 in 1 : vector<4x32xf32>, vector<4x32xf32> -> vector<4x64xf32>
    %389 = arith.mulf %388, %134 : vector<4x64xf32>
    %390 = vector.extract_strided_slice %122 {offsets = [0, 7, 0], sizes = [2, 1, 128], strides = [1, 1, 1]} : vector<2x8x128xf32> to vector<2x1x128xf32>
    %391 = vector.shape_cast %390 : vector<2x1x128xf32> to vector<2x128xf32>
    %392 = vector.extract_strided_slice %123 {offsets = [0, 0, 0], sizes = [2, 1, 128], strides = [1, 1, 1]} : vector<2x8x128xf32> to vector<2x1x128xf32>
    %393 = vector.shape_cast %392 : vector<2x1x128xf32> to vector<2x128xf32>
    %394 = tpu.concatenate %391, %393 in 0 : vector<2x128xf32>, vector<2x128xf32> -> vector<4x128xf32>
    %cst_83 = arith.constant dense<0.000000e+00> : vector<4x128xf32>
    %395 = tpu.matmul %389, %135, %cst_83 {dimension_numbers = #tpu.dot_dimension_numbers<[1], [0], [0], [1], [0, 0, 1, 1], [], []>} : vector<4x64xf32>, vector<64x128xf32>, vector<4x128xf32> -> vector<4x128xf32>
    %396 = arith.addf %394, %395 : vector<4x128xf32>
    %397 = vector.extract_strided_slice %396 {offsets = [0, 0], sizes = [4, 32], strides = [1, 1]} : vector<4x128xf32> to vector<4x32xf32>
    %398 = arith.negf %397 : vector<4x32xf32>
    %399 = math.exp %398 : vector<4x32xf32>
    %cst_84 = arith.constant 1.000000e+00 : f32
    %400 = vector.broadcast %cst_84 : f32 to vector<4x32xf32>
    %401 = arith.addf %400, %399 : vector<4x32xf32>
    %402 = arith.divf %400, %401 : vector<4x32xf32>
    %403 = vector.extract_strided_slice %396 {offsets = [0, 32], sizes = [4, 32], strides = [1, 1]} : vector<4x128xf32> to vector<4x32xf32>
    %404 = arith.negf %403 : vector<4x32xf32>
    %405 = math.exp %404 : vector<4x32xf32>
    %cst_85 = arith.constant 1.000000e+00 : f32
    %406 = vector.broadcast %cst_85 : f32 to vector<4x32xf32>
    %407 = arith.addf %406, %405 : vector<4x32xf32>
    %408 = arith.divf %406, %407 : vector<4x32xf32>
    %409 = vector.extract_strided_slice %396 {offsets = [0, 64], sizes = [4, 32], strides = [1, 1]} : vector<4x128xf32> to vector<4x32xf32>
    %410 = math.tanh %409 : vector<4x32xf32>
    %411 = vector.extract_strided_slice %396 {offsets = [0, 96], sizes = [4, 32], strides = [1, 1]} : vector<4x128xf32> to vector<4x32xf32>
    %412 = arith.negf %411 : vector<4x32xf32>
    %413 = math.exp %412 : vector<4x32xf32>
    %cst_86 = arith.constant 1.000000e+00 : f32
    %414 = vector.broadcast %cst_86 : f32 to vector<4x32xf32>
    %415 = arith.addf %414, %413 : vector<4x32xf32>
    %416 = arith.divf %414, %415 : vector<4x32xf32>
    %417 = arith.mulf %408, %383 : vector<4x32xf32>
    %418 = arith.mulf %402, %410 : vector<4x32xf32>
    %419 = arith.addf %417, %418 : vector<4x32xf32>
    %420 = math.tanh %419 : vector<4x32xf32>
    %421 = arith.mulf %416, %420 : vector<4x32xf32>
    %422 = vector.extract_strided_slice %421 {offsets = [0, 0], sizes = [2, 32], strides = [1, 1]} : vector<4x32xf32> to vector<2x32xf32>
    %423 = vector.extract_strided_slice %421 {offsets = [2, 0], sizes = [2, 32], strides = [1, 1]} : vector<4x32xf32> to vector<2x32xf32>
    %424 = tpu.concatenate %170, %423 in 1 : vector<2x32xf32>, vector<2x32xf32> -> vector<2x64xf32>
    %425 = tpu.concatenate %206, %387 in 1 : vector<2x32xf32>, vector<2x32xf32> -> vector<2x64xf32>
    %426 = tpu.concatenate %242, %351 in 1 : vector<2x32xf32>, vector<2x32xf32> -> vector<2x64xf32>
    %427 = tpu.concatenate %278, %315 in 1 : vector<2x32xf32>, vector<2x32xf32> -> vector<2x64xf32>
    %428 = tpu.concatenate %314, %279 in 1 : vector<2x32xf32>, vector<2x32xf32> -> vector<2x64xf32>
    %429 = tpu.concatenate %350, %243 in 1 : vector<2x32xf32>, vector<2x32xf32> -> vector<2x64xf32>
    %430 = tpu.concatenate %386, %207 in 1 : vector<2x32xf32>, vector<2x32xf32> -> vector<2x64xf32>
    %431 = tpu.concatenate %422, %171 in 1 : vector<2x32xf32>, vector<2x32xf32> -> vector<2x64xf32>
    %432 = vector.shape_cast %424 : vector<2x64xf32> to vector<2x1x64xf32>
    %433 = vector.shape_cast %425 : vector<2x64xf32> to vector<2x1x64xf32>
    %434 = vector.shape_cast %426 : vector<2x64xf32> to vector<2x1x64xf32>
    %435 = vector.shape_cast %427 : vector<2x64xf32> to vector<2x1x64xf32>
    %436 = vector.shape_cast %428 : vector<2x64xf32> to vector<2x1x64xf32>
    %437 = vector.shape_cast %429 : vector<2x64xf32> to vector<2x1x64xf32>
    %438 = vector.shape_cast %430 : vector<2x64xf32> to vector<2x1x64xf32>
    %439 = vector.shape_cast %431 : vector<2x64xf32> to vector<2x1x64xf32>
    %440 = tpu.concatenate %432, %433, %434, %435, %436, %437, %438, %439 in 1 : vector<2x1x64xf32>, vector<2x1x64xf32>, vector<2x1x64xf32>, vector<2x1x64xf32>, vector<2x1x64xf32>, vector<2x1x64xf32>, vector<2x1x64xf32>, vector<2x1x64xf32> -> vector<2x8x64xf32>
    %441 = vector.shape_cast %440 : vector<2x8x64xf32> to vector<16x64xf32>
    %c0_87 = arith.constant 0 : index
    %c0_88 = arith.constant 0 : index
    %442 = vector.load %arg12[%c0_87, %c0_88] : memref<64x128xf32, #tpu.memory_space<vmem>>, vector<64x128xf32>
    %cst_89 = arith.constant dense<0.000000e+00> : vector<16x128xf32>
    %443 = tpu.matmul %441, %442, %cst_89 {dimension_numbers = #tpu.dot_dimension_numbers<[1], [0], [0], [1], [0, 0, 1, 1], [], []>} : vector<16x64xf32>, vector<64x128xf32>, vector<16x128xf32> -> vector<16x128xf32>
    %c0_90 = arith.constant 0 : index
    %c0_91 = arith.constant 0 : index
    %444 = vector.load %arg13[%c0_90, %c0_91] : memref<1x128xf32, #tpu.memory_space<vmem>>, vector<1x128xf32>
    %445 = vector.broadcast %444 : vector<1x128xf32> to vector<16x128xf32>
    %446 = arith.addf %443, %445 : vector<16x128xf32>
    %447 = vector.shape_cast %446 : vector<16x128xf32> to vector<2x8x128xf32>
    %c0_92 = arith.constant 0 : index
    %c0_93 = arith.constant 0 : index
    %c0_94 = arith.constant 0 : index
    %448 = vector.load %arg14[%c0_92, %c0_93, %c0_94] : memref<2x8x128xf32, #tpu.memory_space<vmem>>, vector<2x8x128xf32>
    tpu.vector_store %arg14[%c0_92, %c0_93, %c0_94], %447 {strides = array<i32>} : memref<2x8x128xf32, #tpu.memory_space<vmem>>, vector<2x8x128xf32>,
    return
  }
}

</mosaic_0001>

<llo_original>
// kernel: tpu_custom_call.1
$region0: #{tpu_custom_call.1}
  #allocation0 [shape = 'u32[]', space=smem, size = 0x4, offset = 0x4, fixed_abs, tag = 'smem constant byte address 0x4 - core index']
  #allocation1 [shape = 'u32[72,128]{1,0:T(1,128)}', space=vmem, size = 0x9000, scoped, tag = 'internal scratch']
  %s0 = inlined_call_operand.hbm [shape: f32[2,8,32], index: 0, kind: input, shape index: {}]
  %s1 = inlined_call_operand.hbm [shape: f32[2,1,8], index: 1, kind: input, shape index: {}]
  %s2 = inlined_call_operand.vmem [shape: f32[32,128], index: 2, kind: input, shape index: {}]
  %s3 = inlined_call_operand.vmem [shape: f32[1,128], index: 3, kind: input, shape index: {}]
  %s4 = inlined_call_operand.hbm [shape: f32[4,32], index: 4, kind: input, shape index: {}]
  %s5 = inlined_call_operand.hbm [shape: f32[32,128], index: 5, kind: input, shape index: {}]
  %s6 = inlined_call_operand.vmem [shape: f32[1,128], index: 6, kind: input, shape index: {}]
  %s7 = inlined_call_operand.vmem [shape: f32[128,32], index: 7, kind: input, shape index: {}]
  %s8 = inlined_call_operand.vmem [shape: f32[1,32], index: 8, kind: input, shape index: {}]
  %s9 = inlined_call_operand.vmem [shape: f32[32,256], index: 9, kind: input, shape index: {}]
  %s10 = inlined_call_operand.vmem [shape: f32[1,256], index: 10, kind: input, shape index: {}]
  %s11 = inlined_call_operand.vmem [shape: f32[64,128], index: 11, kind: input, shape index: {}]
  %s12 = inlined_call_operand.hbm [shape: f32[64,128], index: 12, kind: input, shape index: {}]
  %s13 = inlined_call_operand.vmem [shape: f32[1,128], index: 13, kind: input, shape index: {}]
  %s14 = inlined_call_operand.hbm [shape: f32[2,8,128], index: 14, kind: output, shape index: {}]
  %s15 = sld [smem:[#allocation0]]
  $region86: #{tpu_custom_call.1} parent=0
    _
  %s17 = ssub.s32 1, %s15
  %s18 = scalar_select 0, %s17, %s15
  $region1: #{tpu_custom_call.1} parent=0
    #allocation2 [shape = 'u8[8192]{0}', space=vmem, size = 0x2000, scoped, tag = 'input window, operand 0, single buffered']
    #allocation3 [shape = 's32[1]{0}', space=sflag, size = 0x4, scoped, tag = 'scoped memory for tpu_custom_call.1']
    #allocation4 [shape = 's32[1]{0}', space=sflag, size = 0x4, scoped, tag = 'scoped memory for tpu_custom_call.1']
    #allocation5 [shape = 'u8[1024]{0}', space=vmem, size = 0x400, scoped, tag = 'input window, operand 1, single buffered']
    #allocation6 [shape = 's32[1]{0}', space=sflag, size = 0x4, scoped, tag = 'scoped memory for tpu_custom_call.1']
    #allocation7 [shape = 'u8[2048]{0}', space=vmem, size = 0x800, scoped, tag = 'input window, operand 4, single buffered']
    #allocation8 [shape = 'u8[16384]{0}', space=vmem, size = 0x4000, scoped, tag = 'input window, operand 5, single buffered']
    #allocation9 [shape = 's32[1]{0}', space=sflag, size = 0x4, scoped, tag = 'scoped memory for tpu_custom_call.1']
    #allocation10 [shape = 'u8[32768]{0}', space=vmem, size = 0x8000, scoped, tag = 'input window, operand 12, single buffered']
    #allocation11 [shape = 'u8[8192]{0}', space=vmem, size = 0x2000, scoped, tag = 'output window, operand 0, single buffered']
    %19 = vsyncpa [#allocation3], 0
    %20 = vsyncpa [#allocation6], 0
    %21 = vsyncpa [#allocation9], 0
    %22 = vsyncpa [#allocation4], 0
    // Predicated region
    $region2: #{tpu_custom_call.1} parent=1 // pred_check
      _
    $region3: #{tpu_custom_call.1} parent=1 // pred_check_branch
      %24 = sbr.rel (0) target = $region5
    $region4: #{tpu_custom_call.1} parent=1 // pred_region
      %26 = vsyncadd [#allocation3], 0
      %s27 = sshll.u32 %s0, 4
      %s28 = int_to_ptr.hbm [resolvable:$true] %s27
      %s29 = sshll.u32 [#allocation2], 4
      %s30 = int_to_ptr.vmem [resolvable:$true] %s29
      %35 = dma.hbm_to_vmem [thread:$0]  %s28, 256, %s30, [#allocation3], 128, 128, 8
    $region5: #{tpu_custom_call.1} parent=1 // pred_fallthru
      _
    // Predicated region
    $region6: #{tpu_custom_call.1} parent=1 // pred_check
      _
    $region7: #{tpu_custom_call.1} parent=1 // pred_check_branch
      %37 = sbr.rel (0) target = $region9
    $region8: #{tpu_custom_call.1} parent=1 // pred_region
      %39 = vsyncadd [#allocation6], 0
      %s40 = sshll.u32 %s1, 4
      %s41 = int_to_ptr.hbm [resolvable:$true] %s40
      %s42 = sshll.u32 [#allocation5], 4
      %s43 = int_to_ptr.vmem [resolvable:$true] %s42
      %48 = dma.hbm_to_vmem [thread:$0]  %s41, 32, %s43, [#allocation6], 16, 16, 1
    $region9: #{tpu_custom_call.1} parent=1 // pred_fallthru
      _
    // Predicated region
    $region10: #{tpu_custom_call.1} parent=1 // pred_check
      _
    $region11: #{tpu_custom_call.1} parent=1 // pred_check_branch
      %50 = sbr.rel (0) target = $region13
    $region12: #{tpu_custom_call.1} parent=1 // pred_region
      _
    $region13: #{tpu_custom_call.1} parent=1 // pred_fallthru
      _
    // Predicated region
    $region14: #{tpu_custom_call.1} parent=1 // pred_check
      _
    $region15: #{tpu_custom_call.1} parent=1 // pred_check_branch
      %52 = sbr.rel (0) target = $region17
    $region16: #{tpu_custom_call.1} parent=1 // pred_region
      _
    $region17: #{tpu_custom_call.1} parent=1 // pred_fallthru
      _
    // Predicated region
    $region18: #{tpu_custom_call.1} parent=1 // pred_check
      _
    $region19: #{tpu_custom_call.1} parent=1 // pred_check_branch
      %54 = sbr.rel (0) target = $region21
    $region20: #{tpu_custom_call.1} parent=1 // pred_region
      %56 = vsyncadd [#allocation6], 0
      %s58 = sshll.u32 %s4, 4
      %s59 = int_to_ptr.hbm [resolvable:$true] %s58
      %s60 = sshll.u32 [#allocation7], 4
      %s61 = int_to_ptr.vmem [resolvable:$true] %s60
      %63 = dma.hbm_to_vmem [thread:$0]  %s59, 64, %s61, [#allocation6]
    $region21: #{tpu_custom_call.1} parent=1 // pred_fallthru
      _
    // Predicated region
    $region22: #{tpu_custom_call.1} parent=1 // pred_check
      _
    $region23: #{tpu_custom_call.1} parent=1 // pred_check_branch
      %65 = sbr.rel (0) target = $region25
    $region24: #{tpu_custom_call.1} parent=1 // pred_region
      %67 = vsyncadd [#allocation9], 0
      %s68 = sshll.u32 %s5, 4
      %s69 = int_to_ptr.hbm [resolvable:$true] %s68
      %s70 = sshll.u32 [#allocation8], 4
      %s71 = int_to_ptr.vmem [resolvable:$true] %s70
      %76 = dma.hbm_to_vmem [thread:$0]  %s69, 512, %s71, [#allocation9], 128, 128, 8
    $region25: #{tpu_custom_call.1} parent=1 // pred_fallthru
      _
    // Predicated region
    $region26: #{tpu_custom_call.1} parent=1 // pred_check
      _
    $region27: #{tpu_custom_call.1} parent=1 // pred_check_branch
      %78 = sbr.rel (0) target = $region29
    $region28: #{tpu_custom_call.1} parent=1 // pred_region
      _
    $region29: #{tpu_custom_call.1} parent=1 // pred_fallthru
      _
    // Predicated region
    $region30: #{tpu_custom_call.1} parent=1 // pred_check
      _
    $region31: #{tpu_custom_call.1} parent=1 // pred_check_branch
      %80 = sbr.rel (0) target = $region33
    $region32: #{tpu_custom_call.1} parent=1 // pred_region
      _
    $region33: #{tpu_custom_call.1} parent=1 // pred_fallthru
      _
    // Predicated region
    $region34: #{tpu_custom_call.1} parent=1 // pred_check
      _
    $region35: #{tpu_custom_call.1} parent=1 // pred_check_branch
      %82 = sbr.rel (0) target = $region37
    $region36: #{tpu_custom_call.1} parent=1 // pred_region
      _
    $region37: #{tpu_custom_call.1} parent=1 // pred_fallthru
      _
    // Predicated region
    $region38: #{tpu_custom_call.1} parent=1 // pred_check
      _
    $region39: #{tpu_custom_call.1} parent=1 // pred_check_branch
      %84 = sbr.rel (0) target = $region41
    $region40: #{tpu_custom_call.1} parent=1 // pred_region
      _
    $region41: #{tpu_custom_call.1} parent=1 // pred_fallthru
      _
    // Predicated region
    $region42: #{tpu_custom_call.1} parent=1 // pred_check
      _
    $region43: #{tpu_custom_call.1} parent=1 // pred_check_branch
      %86 = sbr.rel (0) target = $region45
    $region44: #{tpu_custom_call.1} parent=1 // pred_region
      _
    $region45: #{tpu_custom_call.1} parent=1 // pred_fallthru
      _
    // Predicated region
    $region46: #{tpu_custom_call.1} parent=1 // pred_check
      _
    $region47: #{tpu_custom_call.1} parent=1 // pred_check_branch
      %88 = sbr.rel (0) target = $region49
    $region48: #{tpu_custom_call.1} parent=1 // pred_region
      _
    $region49: #{tpu_custom_call.1} parent=1 // pred_fallthru
      _
    // Predicated region
    $region50: #{tpu_custom_call.1} parent=1 // pred_check
      _
    $region51: #{tpu_custom_call.1} parent=1 // pred_check_branch
      %90 = sbr.rel (0) target = $region53
    $region52: #{tpu_custom_call.1} parent=1 // pred_region
      %92 = vsyncadd [#allocation9], 0
      %s93 = sshll.u32 %s12, 4
      %s94 = int_to_ptr.hbm [resolvable:$true] %s93
      %s95 = sshll.u32 [#allocation10], 4
      %s96 = int_to_ptr.vmem [resolvable:$true] %s95
      %101 = dma.hbm_to_vmem [thread:$0]  %s94, 1024, %s96, [#allocation9], 128, 128, 8
    $region53: #{tpu_custom_call.1} parent=1 // pred_fallthru
      _
    // Predicated region
    $region54: #{tpu_custom_call.1} parent=1 // pred_check
      _
    $region55: #{tpu_custom_call.1} parent=1 // pred_check_branch
      %103 = sbr.rel (0) target = $region57
    $region56: #{tpu_custom_call.1} parent=1 // pred_region
      _
    $region57: #{tpu_custom_call.1} parent=1 // pred_fallthru
      _
    // Predicated region
    $region58: #{tpu_custom_call.1} parent=1 // pred_check
      _
    $region59: #{tpu_custom_call.1} parent=1 // pred_check_branch
      %105 = sbr.rel (0) target = $region61
    $region60: #{tpu_custom_call.1} parent=1 // pred_region
      %107 = dma.done [#allocation3], 256
    $region61: #{tpu_custom_call.1} parent=1 // pred_fallthru
      _
    // Predicated region
    $region62: #{tpu_custom_call.1} parent=1 // pred_check
      _
    $region63: #{tpu_custom_call.1} parent=1 // pred_check_branch
      %109 = sbr.rel (0) target = $region65
    $region64: #{tpu_custom_call.1} parent=1 // pred_region
      %111 = dma.done [#allocation6], 32
    $region65: #{tpu_custom_call.1} parent=1 // pred_fallthru
      _
    // Predicated region
    $region66: #{tpu_custom_call.1} parent=1 // pred_check
      _
    $region67: #{tpu_custom_call.1} parent=1 // pred_check_branch
      %113 = sbr.rel (0) target = $region69
    $region68: #{tpu_custom_call.1} parent=1 // pred_region
      %115 = dma.done [#allocation6], 64
    $region69: #{tpu_custom_call.1} parent=1 // pred_fallthru
      _
    // Predicated region
    $region70: #{tpu_custom_call.1} parent=1 // pred_check
      _
    $region71: #{tpu_custom_call.1} parent=1 // pred_check_branch
      %117 = sbr.rel (0) target = $region73
    $region72: #{tpu_custom_call.1} parent=1 // pred_region
      %119 = dma.done [#allocation9], 512
    $region73: #{tpu_custom_call.1} parent=1 // pred_fallthru
      _
    // Predicated region
    $region74: #{tpu_custom_call.1} parent=1 // pred_check
      _
    $region75: #{tpu_custom_call.1} parent=1 // pred_check_branch
      %121 = sbr.rel (0) target = $region77
    $region76: #{tpu_custom_call.1} parent=1 // pred_region
      %123 = dma.done [#allocation9], 1024
    $region77: #{tpu_custom_call.1} parent=1 // pred_fallthru
      _
    %v124 = vld [vmem:[#allocation2] sm:$0xff]
    %v125 = vld [vmem:[#allocation2 + $0x8] sm:$0xff]
    %v126 = vld [vmem:[%s2] sm:$0xff]
    %v127 = vld [vmem:[%s2 + $0x8] sm:$0xff]
    %v128 = vld [vmem:[%s2 + $0x10] sm:$0xff]
    %v129 = vld [vmem:[%s2 + $0x18] sm:$0xff]
    %v130 = vld [vmem:[%s3] sm:$0x1]
    %v131 = vld [vmem:[#allocation7] sm:$0xf]
    %v133 = vperm.slane %v130, 0
    %vm135 = vcmask 261120
    %v137 = vsel %vm135, %v124, 0
    %v140 = vsel %vm135, %v125, 0
    %142 = vmatpush.msra.mxu0 0.0
    %143 = vmatpush.msra.mxu0 0.0
    %144 = vmatpush.msra.mxu0 0.0
    %145 = vmatpush.msra.mxu0 0.0
    %146 = vmatpush.msra.mxu0 0.0
    %147 = vmatpush.msra.mxu0 0.0
    %148 = vmatpush.msra.mxu0 0.0
    %149 = vmatpush.msra.mxu0 0.0
    %150 = vmatpush.msra.mxu0 0.0
    %151 = vmatpush.msra.mxu0 0.0
    %152 = vmatpush.msra.mxu0 0.0
    %153 = vmatpush.msra.mxu0 0.0
    %154 = vmatpush.msra.mxu0 %v129
    %155 = vmatpush.msra.mxu0 %v128
    %156 = vmatpush.msra.mxu0 %v127
    %157 = vmatpush.msra.mxu0 %v126
    %158 = vmatmul.f32.gmra.mxu0 %v137
    %v159 = vpop.f32.mrf.mxu0
    %v160 = vadd.f32 %v133, %v159
    %161 = vmatmul.f32.gmra.mxu0 %v140
    %v162 = vpop.f32.mrf.mxu0
    %v163 = vadd.f32 %v133, %v162
    %164 = vdwg.mxu0
    %166 = vrot.lane.b32.xlu0 %v160, 96
    %v167 = vpop.permute.xlu0 %166
    %v168 = vsel %vm135, %v160, 0
    %v170 = vsel %vm135, %v167, 0
    %172 = vmatpush.xpose.msra.mxu0 0.0
    %173 = vmatpush.xpose.msra.mxu0 0.0
    %174 = vmatpush.xpose.msra.mxu0 0.0
    %175 = vmatpush.xpose.msra.mxu0 0.0
    %176 = vmatpush.xpose.msra.mxu0 0.0
    %177 = vmatpush.xpose.msra.mxu0 0.0
    %178 = vmatpush.xpose.msra.mxu0 0.0
    %179 = vmatpush.xpose.msra.mxu0 0.0
    %180 = vmatpush.xpose.msra.mxu0 0.0
    %181 = vmatpush.xpose.msra.mxu0 0.0
    %182 = vmatpush.xpose.msra.mxu0 0.0
    %183 = vmatpush.xpose.msra.mxu0 0.0
    %184 = vmatpush.xpose.msra.mxu0 0.0
    %185 = vmatpush.xpose.msra.mxu0 0.0
    %186 = vmatpush.xpose.msra.mxu0 0.0
    %187 = vmatpush.xpose.msra.mxu0 %v170
    %188 = vmatmul.f32.gmra.mxu0 %v168
    %v189 = vpop.f32.mrf.mxu0
    %v190 = vadd.f32 0.0, %v189
    %191 = vdwg.mxu0
    %193 = vrot.lane.b32.xlu0 %v163, 96
    %v194 = vpop.permute.xlu0 %193
    %v195 = vsel %vm135, %v163, 0
    %v197 = vsel %vm135, %v194, 0
    %199 = vmatpush.xpose.msra.mxu0 0.0
    %200 = vmatpush.xpose.msra.mxu0 0.0
    %201 = vmatpush.xpose.msra.mxu0 0.0
    %202 = vmatpush.xpose.msra.mxu0 0.0
    %203 = vmatpush.xpose.msra.mxu0 0.0
    %204 = vmatpush.xpose.msra.mxu0 0.0
    %205 = vmatpush.xpose.msra.mxu0 0.0
    %206 = vmatpush.xpose.msra.mxu0 0.0
    %207 = vmatpush.xpose.msra.mxu0 0.0
    %208 = vmatpush.xpose.msra.mxu0 0.0
    %209 = vmatpush.xpose.msra.mxu0 0.0
    %210 = vmatpush.xpose.msra.mxu0 0.0
    %211 = vmatpush.xpose.msra.mxu0 0.0
    %212 = vmatpush.xpose.msra.mxu0 0.0
    %213 = vmatpush.xpose.msra.mxu0 0.0
    %214 = vmatpush.xpose.msra.mxu0 %v197
    %215 = vmatmul.f32.gmra.mxu0 %v195
    %v216 = vpop.f32.mrf.mxu0
    %v217 = vadd.f32 0.0, %v216
    %218 = vdwg.mxu0
    %v219 = vmul.f32 %v190, 0.17677669
    %v220 = vmul.f32 %v217, 0.17677669
    %v221 = vld [vmem:[#allocation5] sm:$0x1]
    %v222 = vld [vmem:[#allocation5 + $0x1] sm:$0x1]
    %v223 = vsub.f32 %v221, 1.0
    %v224 = vsub.f32 %v222, 1.0
    %v225 = vmul.f32 %v223, 1e+09
    %v226 = vmul.f32 %v224, 1e+09
    %v229 = vperm.slane %v225, 0
    %v230 = vperm.slane %v226, 0
    %v233 = vadd.f32 %v219, %v229
    %v234 = vadd.f32 %v220, %v230
    %vm235 = vcmask 64512
    %v236 = vsel %vm235, %v233, -inf
    %237 = vmax.xlane.f32.xlu0 %v236
    %v238 = vpop.xlane.xlu0 %237
    %v239 = vsel %vm235, %v234, -inf
    %240 = vmax.xlane.f32.xlu0 %v239
    %v241 = vpop.xlane.xlu0 %240
    %v242 = vsub.f32 %v233, %v238
    %v243 = vsub.f32 %v234, %v241
    %v244 = vmul.f32 %v242, 1.442695
    %v245 = vpow.pop %v244
    %v246 = vmul.f32 %v243, 1.442695
    %v247 = vpow.pop %v246
    %v248 = vsel %vm235, %v245, 0.0
    %249 = vadd.xlane.f32.xlu0 %v248
    %v250 = vpop.xlane.xlu0 %249
    %v251 = vsel %vm235, %v247, 0.0
    %252 = vadd.xlane.f32.xlu0 %v251
    %v253 = vpop.xlane.xlu0 %252
    %v254 = vrcp.pop %v250
    %v255 = vrcp.pop %v253
    %v256 = vmul.f32 %v245, %v254
    %v257 = vmul.f32 %v247, %v255
    %258 = vrot.lane.b32.xlu0 %v160, 64
    %v259 = vpop.permute.xlu0 %258
    %v262 = vsel %vm235, %v256, 0
    %264 = vmatpush.msra.mxu0 0.0
    %265 = vmatpush.msra.mxu0 0.0
    %266 = vmatpush.msra.mxu0 0.0
    %267 = vmatpush.msra.mxu0 0.0
    %268 = vmatpush.msra.mxu0 0.0
    %269 = vmatpush.msra.mxu0 0.0
    %270 = vmatpush.msra.mxu0 0.0
    %271 = vmatpush.msra.mxu0 0.0
    %272 = vmatpush.msra.mxu0 0.0
    %273 = vmatpush.msra.mxu0 0.0
    %274 = vmatpush.msra.mxu0 0.0
    %275 = vmatpush.msra.mxu0 0.0
    %276 = vmatpush.msra.mxu0 0.0
    %277 = vmatpush.msra.mxu0 0.0
    %278 = vmatpush.msra.mxu0 0.0
    %279 = vmatpush.msra.mxu0 %v259
    %280 = vmatmul.f32.gmra.mxu0 %v262
    %v281 = vpop.f32.mrf.mxu0
    %v282 = vadd.f32 0.0, %v281
    %283 = vdwg.mxu0
    %284 = vrot.lane.b32.xlu0 %v163, 64
    %v285 = vpop.permute.xlu0 %284
    %v288 = vsel %vm235, %v257, 0
    %290 = vmatpush.msra.mxu0 0.0
    %291 = vmatpush.msra.mxu0 0.0
    %292 = vmatpush.msra.mxu0 0.0
    %293 = vmatpush.msra.mxu0 0.0
    %294 = vmatpush.msra.mxu0 0.0
    %295 = vmatpush.msra.mxu0 0.0
    %296 = vmatpush.msra.mxu0 0.0
    %297 = vmatpush.msra.mxu0 0.0
    %298 = vmatpush.msra.mxu0 0.0
    %299 = vmatpush.msra.mxu0 0.0
    %300 = vmatpush.msra.mxu0 0.0
    %301 = vmatpush.msra.mxu0 0.0
    %302 = vmatpush.msra.mxu0 0.0
    %303 = vmatpush.msra.mxu0 0.0
    %304 = vmatpush.msra.mxu0 0.0
    %305 = vmatpush.msra.mxu0 %v285
    %306 = vmatmul.f32.gmra.mxu0 %v288
    %v307 = vpop.f32.mrf.mxu0
    %v308 = vadd.f32 0.0, %v307
    %309 = vdwg.mxu0
    %314 = vrot.lane.b32.xlu0 %v126, 32
    %v315 = vpop.permute.xlu0 %314
    %316 = vrot.lane.b32.xlu0 %v127, 32
    %v317 = vpop.permute.xlu0 %316
    %318 = vrot.lane.b32.xlu0 %v128, 32
    %v319 = vpop.permute.xlu0 %318
    %320 = vrot.lane.b32.xlu0 %v129, 32
    %v321 = vpop.permute.xlu0 %320
    %326 = vrot.lane.b32.xlu0 %v133, 32
    %v327 = vpop.permute.xlu0 %326
    %v330 = vsel %vm135, %v282, 0
    %v333 = vsel %vm135, %v308, 0
    %335 = vmatpush.msra.mxu0 0.0
    %336 = vmatpush.msra.mxu0 0.0
    %337 = vmatpush.msra.mxu0 0.0
    %338 = vmatpush.msra.mxu0 0.0
    %339 = vmatpush.msra.mxu0 0.0
    %340 = vmatpush.msra.mxu0 0.0
    %341 = vmatpush.msra.mxu0 0.0
    %342 = vmatpush.msra.mxu0 0.0
    %343 = vmatpush.msra.mxu0 0.0
    %344 = vmatpush.msra.mxu0 0.0
    %345 = vmatpush.msra.mxu0 0.0
    %346 = vmatpush.msra.mxu0 0.0
    %347 = vmatpush.msra.mxu0 %v321
    %348 = vmatpush.msra.mxu0 %v319
    %349 = vmatpush.msra.mxu0 %v317
    %350 = vmatpush.msra.mxu0 %v315
    %351 = vmatmul.f32.gmra.mxu0 %v330
    %v352 = vpop.f32.mrf.mxu0
    %v353 = vadd.f32 %v327, %v352
    %354 = vmatmul.f32.gmra.mxu0 %v333
    %v355 = vpop.f32.mrf.mxu0
    %v356 = vadd.f32 %v327, %v355
    %357 = vdwg.mxu0
    %v358 = vadd.f32 %v124, %v353
    %v359 = vadd.f32 %v125, %v356
    %v360 = vsel %vm135, %v358, 0.0
    %361 = vadd.xlane.f32.xlu0 %v360
    %v362 = vpop.xlane.xlu0 %361
    %v363 = vsel %vm135, %v359, 0.0
    %364 = vadd.xlane.f32.xlu0 %v363
    %v365 = vpop.xlane.xlu0 %364
    %v366 = vrcp.pop 32.0
    %v367 = vmul.f32 32.0, %v366
    %v368 = vsub.f32 1.0, %v367
    %v369 = vmul.f32 %v366, %v368
    %v370 = vadd.f32 %v366, %v369
    %vm371 = vweird.f32 %v366
    %v372 = vsel %vm371, %v366, %v370
    %v373 = vmul.f32 %v362, %v372
    %v374 = vmul.f32 %v365, %v372
    %v375 = vsub.f32 %v358, %v373
    %v376 = vsub.f32 %v359, %v374
    %v377 = vmul.f32 %v375, %v375
    %v378 = vmul.f32 %v376, %v376
    %v379 = vsel %vm135, %v377, 0.0
    %380 = vadd.xlane.f32.xlu0 %v379
    %v381 = vpop.xlane.xlu0 %380
    %v382 = vsel %vm135, %v378, 0.0
    %383 = vadd.xlane.f32.xlu0 %v382
    %v384 = vpop.xlane.xlu0 %383
    %v385 = vmul.f32 %v381, %v372
    %v386 = vmul.f32 %v384, %v372
    %v387 = vadd.f32 %v385, 1e-05
    %v388 = vadd.f32 %v386, 1e-05
    %v389 = vrsqrt.pop %v387
    %v390 = vmul.f32 %v389, %v387
    %v391 = vmul.f32 %v390, %v389
    %v392 = vmul.f32 0.5, %v391
    %v393 = vsub.f32 1.5, %v392
    %v394 = vmul.f32 %v389, %v393
    %vm395 = vweird.f32 %v387
    %vm396 = vweird.f32 %v389
    %vm397 = vmor %vm395, %vm396
    %v398 = vsel %vm397, %v389, %v394
    %v399 = vrsqrt.pop %v388
    %v400 = vmul.f32 %v399, %v388
    %v401 = vmul.f32 %v400, %v399
    %v402 = vmul.f32 0.5, %v401
    %v403 = vsub.f32 1.5, %v402
    %v404 = vmul.f32 %v399, %v403
    %vm405 = vweird.f32 %v388
    %vm406 = vweird.f32 %v399
    %vm407 = vmor %vm405, %vm406
    %v408 = vsel %vm407, %v399, %v404
    %v409 = vmul.f32 %v375, %v398
    %v410 = vmul.f32 %v376, %v408
    %v411 = vperm.slane %v131, 0
    %v412 = vmul.f32 %v409, %v411
    %v413 = vmul.f32 %v410, %v411
    %v414 = vperm.slane %v131, 1
    %v415 = vadd.f32 %v412, %v414
    %v416 = vadd.f32 %v413, %v414
    %v417 = vld [vmem:[#allocation8] sm:$0xff]
    %v418 = vld [vmem:[#allocation8 + $0x8] sm:$0xff]
    %v419 = vld [vmem:[#allocation8 + $0x10] sm:$0xff]
    %v420 = vld [vmem:[#allocation8 + $0x18] sm:$0xff]
    %v421 = vld [vmem:[%s6] sm:$0x1]
    %v423 = vperm.slane %v421, 0
    %v426 = vsel %vm135, %v415, 0
    %v429 = vsel %vm135, %v416, 0
    %431 = vmatpush.msra.mxu0 0.0
    %432 = vmatpush.msra.mxu0 0.0
    %433 = vmatpush.msra.mxu0 0.0
    %434 = vmatpush.msra.mxu0 0.0
    %435 = vmatpush.msra.mxu0 0.0
    %436 = vmatpush.msra.mxu0 0.0
    %437 = vmatpush.msra.mxu0 0.0
    %438 = vmatpush.msra.mxu0 0.0
    %439 = vmatpush.msra.mxu0 0.0
    %440 = vmatpush.msra.mxu0 0.0
    %441 = vmatpush.msra.mxu0 0.0
    %442 = vmatpush.msra.mxu0 0.0
    %443 = vmatpush.msra.mxu0 %v420
    %444 = vmatpush.msra.mxu0 %v419
    %445 = vmatpush.msra.mxu0 %v418
    %446 = vmatpush.msra.mxu0 %v417
    %447 = vmatmul.f32.gmra.mxu0 %v426
    %v448 = vpop.f32.mrf.mxu0
    %v449 = vadd.f32 %v423, %v448
    %450 = vmatmul.f32.gmra.mxu0 %v429
    %v451 = vpop.f32.mrf.mxu0
    %v452 = vadd.f32 %v423, %v451
    %453 = vdwg.mxu0
    %v454 = vmul.f32 %v449, 0.5
    %v455 = vmul.f32 %v452, 0.5
    %v456 = vmul.f32 %v449, 0.044715
    %v457 = vmul.f32 %v452, 0.044715
    %v458 = vmul.f32 %v456, %v449
    %v459 = vmul.f32 %v457, %v452
    %v460 = vmul.f32 %v458, %v449
    %v461 = vmul.f32 %v459, %v452
    %v462 = vadd.f32 %v449, %v460
    %v463 = vadd.f32 %v452, %v461
    %v464 = vmul.f32 %v462, 0.7978846
    %v465 = vmul.f32 %v463, 0.7978846
    %v466 = vtanh.pop %v464
    %v467 = vtanh.pop %v465
    %v468 = vadd.f32 %v466, 1.0
    %v469 = vadd.f32 %v467, 1.0
    %v470 = vmul.f32 %v454, %v468
    %v471 = vmul.f32 %v455, %v469
    %v472 = vld [vmem:[%s7] sm:$0xff]
    %v473 = vld [vmem:[%s7 + $0x8] sm:$0xff]
    %v474 = vld [vmem:[%s7 + $0x10] sm:$0xff]
    %v475 = vld [vmem:[%s7 + $0x18] sm:$0xff]
    %v476 = vld [vmem:[%s7 + $0x20] sm:$0xff]
    %v477 = vld [vmem:[%s7 + $0x28] sm:$0xff]
    %v478 = vld [vmem:[%s7 + $0x30] sm:$0xff]
    %v479 = vld [vmem:[%s7 + $0x38] sm:$0xff]
    %v480 = vld [vmem:[%s7 + $0x40] sm:$0xff]
    %v481 = vld [vmem:[%s7 + $0x48] sm:$0xff]
    %v482 = vld [vmem:[%s7 + $0x50] sm:$0xff]
    %v483 = vld [vmem:[%s7 + $0x58] sm:$0xff]
    %v484 = vld [vmem:[%s7 + $0x60] sm:$0xff]
    %v485 = vld [vmem:[%s7 + $0x68] sm:$0xff]
    %v486 = vld [vmem:[%s7 + $0x70] sm:$0xff]
    %v487 = vld [vmem:[%s7 + $0x78] sm:$0xff]
    %v488 = vld [vmem:[%s8] sm:$0x1]
    %v490 = vperm.slane %v488, 0
    %492 = vmatpush.msra.mxu0 %v487
    %493 = vmatpush.msra.mxu0 %v486
    %494 = vmatpush.msra.mxu0 %v485
    %495 = vmatpush.msra.mxu0 %v484
    %496 = vmatpush.msra.mxu0 %v483
    %497 = vmatpush.msra.mxu0 %v482
    %498 = vmatpush.msra.mxu0 %v481
    %499 = vmatpush.msra.mxu0 %v480
    %500 = vmatpush.msra.mxu0 %v479
    %501 = vmatpush.msra.mxu0 %v478
    %502 = vmatpush.msra.mxu0 %v477
    %503 = vmatpush.msra.mxu0 %v476
    %504 = vmatpush.msra.mxu0 %v475
    %505 = vmatpush.msra.mxu0 %v474
    %506 = vmatpush.msra.mxu0 %v473
    %507 = vmatpush.msra.mxu0 %v472
    %508 = vmatmul.f32.gmra.mxu0 %v470
    %v509 = vpop.f32.mrf.mxu0
    %v510 = vadd.f32 %v490, %v509
    %511 = vmatmul.f32.gmra.mxu0 %v471
    %v512 = vpop.f32.mrf.mxu0
    %v513 = vadd.f32 %v490, %v512
    %514 = vdwg.mxu0
    %v515 = vadd.f32 %v415, %v510
    %v516 = vadd.f32 %v416, %v513
    %v517 = vsel %vm135, %v515, 0.0
    %518 = vadd.xlane.f32.xlu0 %v517
    %v519 = vpop.xlane.xlu0 %518
    %v520 = vsel %vm135, %v516, 0.0
    %521 = vadd.xlane.f32.xlu0 %v520
    %v522 = vpop.xlane.xlu0 %521
    %v523 = vmul.f32 %v519, %v372
    %v524 = vmul.f32 %v522, %v372
    %v525 = vsub.f32 %v515, %v523
    %v526 = vsub.f32 %v516, %v524
    %v527 = vmul.f32 %v525, %v525
    %v528 = vmul.f32 %v526, %v526
    %v529 = vsel %vm135, %v527, 0.0
    %530 = vadd.xlane.f32.xlu0 %v529
    %v531 = vpop.xlane.xlu0 %530
    %v532 = vsel %vm135, %v528, 0.0
    %533 = vadd.xlane.f32.xlu0 %v532
    %v534 = vpop.xlane.xlu0 %533
    %v535 = vmul.f32 %v531, %v372
    %v536 = vmul.f32 %v534, %v372
    %v537 = vadd.f32 %v535, 1e-05
    %v538 = vadd.f32 %v536, 1e-05
    %v539 = vrsqrt.pop %v537
    %v540 = vmul.f32 %v539, %v537
    %v541 = vmul.f32 %v540, %v539
    %v542 = vmul.f32 0.5, %v541
    %v543 = vsub.f32 1.5, %v542
    %v544 = vmul.f32 %v539, %v543
    %vm545 = vweird.f32 %v537
    %vm546 = vweird.f32 %v539
    %vm547 = vmor %vm545, %vm546
    %v548 = vsel %vm547, %v539, %v544
    %v549 = vrsqrt.pop %v538
    %v550 = vmul.f32 %v549, %v538
    %v551 = vmul.f32 %v550, %v549
    %v552 = vmul.f32 0.5, %v551
    %v553 = vsub.f32 1.5, %v552
    %v554 = vmul.f32 %v549, %v553
    %vm555 = vweird.f32 %v538
    %vm556 = vweird.f32 %v549
    %vm557 = vmor %vm555, %vm556
    %v558 = vsel %vm557, %v549, %v554
    %v559 = vmul.f32 %v525, %v548
    %v560 = vmul.f32 %v526, %v558
    %v561 = vperm.slane %v131, 2
    %v562 = vmul.f32 %v559, %v561
    %v563 = vmul.f32 %v560, %v561
    %v564 = vperm.slane %v131, 3
    %v565 = vadd.f32 %v562, %v564
    %v566 = vadd.f32 %v563, %v564
    %v567 = vld [vmem:[%s9] sm:$0xff]
    %v568 = vld [vmem:[%s9 + $0x8] sm:$0xff]
    %v569 = vld [vmem:[%s9 + $0x10] sm:$0xff]
    %v570 = vld [vmem:[%s9 + $0x18] sm:$0xff]
    %v571 = vld [vmem:[%s9 + $0x20] sm:$0xff]
    %v572 = vld [vmem:[%s9 + $0x28] sm:$0xff]
    %v573 = vld [vmem:[%s9 + $0x30] sm:$0xff]
    %v574 = vld [vmem:[%s9 + $0x38] sm:$0xff]
    %v575 = vld [vmem:[%s10] sm:$0x3]
    %v577 = vperm.slane %v575, 0
    %v578 = vperm.slane %v575, 1
    %v582 = vsel %vm135, %v565, 0
    %v585 = vsel %vm135, %v566, 0
    %587 = vmatpush.msra.mxu0 0.0
    %588 = vmatpush.msra.mxu0 0.0
    %589 = vmatpush.msra.mxu0 0.0
    %590 = vmatpush.msra.mxu0 0.0
    %591 = vmatpush.msra.mxu0 0.0
    %592 = vmatpush.msra.mxu0 0.0
    %593 = vmatpush.msra.mxu0 0.0
    %594 = vmatpush.msra.mxu0 0.0
    %595 = vmatpush.msra.mxu0 0.0
    %596 = vmatpush.msra.mxu0 0.0
    %597 = vmatpush.msra.mxu0 0.0
    %598 = vmatpush.msra.mxu0 0.0
    %599 = vmatpush.msra.mxu0 %v573
    %600 = vmatpush.msra.mxu0 %v571
    %601 = vmatpush.msra.mxu0 %v569
    %602 = vmatpush.msra.mxu0 %v567
    %603 = vmatmul.f32.gmra.mxu0 %v582
    %v604 = vpop.f32.mrf.mxu0
    %v605 = vadd.f32 %v577, %v604
    %606 = vmatmul.f32.gmra.mxu0 %v585
    %v607 = vpop.f32.mrf.mxu0
    %v608 = vadd.f32 %v577, %v607
    %609 = vdwg.mxu0
    %610 = vmatpush.msra.mxu0 0.0
    %611 = vmatpush.msra.mxu0 0.0
    %612 = vmatpush.msra.mxu0 0.0
    %613 = vmatpush.msra.mxu0 0.0
    %614 = vmatpush.msra.mxu0 0.0
    %615 = vmatpush.msra.mxu0 0.0
    %616 = vmatpush.msra.mxu0 0.0
    %617 = vmatpush.msra.mxu0 0.0
    %618 = vmatpush.msra.mxu0 0.0
    %619 = vmatpush.msra.mxu0 0.0
    %620 = vmatpush.msra.mxu0 0.0
    %621 = vmatpush.msra.mxu0 0.0
    %622 = vmatpush.msra.mxu0 %v574
    %623 = vmatpush.msra.mxu0 %v572
    %624 = vmatpush.msra.mxu0 %v570
    %625 = vmatpush.msra.mxu0 %v568
    %626 = vmatmul.f32.gmra.mxu0 %v582
    %v627 = vpop.f32.mrf.mxu0
    %v628 = vadd.f32 %v578, %v627
    %629 = vmatmul.f32.gmra.mxu0 %v585
    %v630 = vpop.f32.mrf.mxu0
    %v631 = vadd.f32 %v578, %v630
    %632 = vdwg.mxu0
    %v633 = vlaneseq
    %v634 = vshrl.u32 %v633, 7
    %v635 = vlaneseq
    %v636 = vand.u32 %v635, 127
    %vm637 = vcmp.lt.s32.totalorder %v634, 2
    %vm638 = vcmp.lt.s32.totalorder %v636, 32
    %vm639 = vmxor %vm637, %vm638
    %vm640 = vmxor %vm639, 1
    %v641 = vsel %vm640, 1.0, 0.0
    %v642 = vld [vmem:[%s11] sm:$0xff]
    %v643 = vld [vmem:[%s11 + $0x8] sm:$0xff]
    %v644 = vld [vmem:[%s11 + $0x10] sm:$0xff]
    %v645 = vld [vmem:[%s11 + $0x18] sm:$0xff]
    %v646 = vld [vmem:[%s11 + $0x20] sm:$0xff]
    %v647 = vld [vmem:[%s11 + $0x28] sm:$0xff]
    %v648 = vld [vmem:[%s11 + $0x30] sm:$0xff]
    %v649 = vld [vmem:[%s11 + $0x38] sm:$0xff]
    %v652 = vrot.slane %v608, 7
    %vm653 = vcmask 1041409
    %v654 = vsel %vm653, %v652, %v605
    %v658 = vrot.slane %v628, 5
    %v659 = vrot.slane %v631, 4
    %vm660 = vcmask 1043459
    %v661 = vsel %vm660, %v659, %v658
    %vm663 = vcmask 1041408
    %v664 = vsel %vm663, %v654, %v661
    %vm665 = vcmask 523264
    %v667 = vsel %vm665, 0.0, 0
    %669 = vmatpush.msra.mxu0 0.0
    %670 = vmatpush.msra.mxu0 0.0
    %671 = vmatpush.msra.mxu0 0.0
    %672 = vmatpush.msra.mxu0 0.0
    %673 = vmatpush.msra.mxu0 0.0
    %674 = vmatpush.msra.mxu0 0.0
    %675 = vmatpush.msra.mxu0 0.0
    %676 = vmatpush.msra.mxu0 0.0
    %677 = vmatpush.msra.mxu0 %v649
    %678 = vmatpush.msra.mxu0 %v648
    %679 = vmatpush.msra.mxu0 %v647
    %680 = vmatpush.msra.mxu0 %v646
    %681 = vmatpush.msra.mxu0 %v645
    %682 = vmatpush.msra.mxu0 %v644
    %683 = vmatpush.msra.mxu0 %v643
    %684 = vmatpush.msra.mxu0 %v642
    %685 = vmatmul.f32.gmra.mxu0 %v667
    %v686 = vpop.f32.mrf.mxu0
    %v687 = vadd.f32 0.0, %v686
    %688 = vdwg.mxu0
    %v689 = vadd.f32 %v664, %v687
    %v690 = vxor.u32 %v689, 2147483648
    %v691 = vmul.f32 %v690, 1.442695
    %v692 = vpow.pop %v691
    %v693 = vadd.f32 %v692, 1.0
    %v694 = vrcp.pop %v693
    %v695 = vmul.f32 %v693, %v694
    %v696 = vsub.f32 1.0, %v695
    %v697 = vmul.f32 %v694, %v696
    %v698 = vadd.f32 %v694, %v697
    %vm699 = vweird.f32 %v693
    %vm700 = vweird.f32 %v694
    %vm701 = vmor %vm699, %vm700
    %v702 = vsel %vm701, %v694, %v698
    %v703 = vand.u32 2147483647, %v693
    %vm704 = vcmp.eq.f32.partialorder %v703, 8.507059e+37
    %v705 = vand.u32 %v693, 2147483648
    %v706 = vor.u32 1.1754944e-38, %v705
    %v707 = vsel %vm704, %v706, %v702
    %v708 = vmul.f32 1.0, %v707
    %v709 = vtanh.pop %v689
    %v710 = vmul.f32 %v708, 0.0
    %712 = vrot.lane.b32.xlu0 %v709, 64
    %v713 = vpop.permute.xlu0 %712
    %v715 = vmul.f32 %v708, %v713
    %717 = vrot.lane.b32.xlu0 %v715, 32
    %v718 = vpop.permute.xlu0 %717
    %v720 = vadd.f32 %v710, %v718
    %v721 = vtanh.pop %v720
    %723 = vrot.lane.b32.xlu0 %v721, 64
    %v724 = vpop.permute.xlu0 %723
    %v726 = vmul.f32 %v708, %v724
    %728 = vrot.lane.b32.xlu0 %v726, 32
    %v729 = vpop.permute.xlu0 %728
    %731 = vrot.lane.b32.xlu0 %v726, 64
    %v732 = vpop.permute.xlu0 %731
    %v734 = vsel %vm135, %v729, %v732
    %v735 = vmul.f32 %v734, %v641
    %v736 = vrot.slane %v605, 1
    %v737 = vsel %vm653, %v608, %v736
    %v739 = vrot.slane %v628, 4
    %v740 = vrot.slane %v631, 3
    %v741 = vsel %vm660, %v740, %v739
    %v743 = vsel %vm663, %v737, %v741
    %v745 = vsel %vm665, %v735, 0
    %747 = vmatpush.msra.mxu0 0.0
    %748 = vmatpush.msra.mxu0 0.0
    %749 = vmatpush.msra.mxu0 0.0
    %750 = vmatpush.msra.mxu0 0.0
    %751 = vmatpush.msra.mxu0 0.0
    %752 = vmatpush.msra.mxu0 0.0
    %753 = vmatpush.msra.mxu0 0.0
    %754 = vmatpush.msra.mxu0 0.0
    %755 = vmatpush.msra.mxu0 %v649
    %756 = vmatpush.msra.mxu0 %v648
    %757 = vmatpush.msra.mxu0 %v647
    %758 = vmatpush.msra.mxu0 %v646
    %759 = vmatpush.msra.mxu0 %v645
    %760 = vmatpush.msra.mxu0 %v644
    %761 = vmatpush.msra.mxu0 %v643
    %762 = vmatpush.msra.mxu0 %v642
    %763 = vmatmul.f32.gmra.mxu0 %v745
    %v764 = vpop.f32.mrf.mxu0
    %v765 = vadd.f32 0.0, %v764
    %766 = vdwg.mxu0
    %v767 = vadd.f32 %v743, %v765
    %v768 = vxor.u32 %v767, 2147483648
    %v769 = vmul.f32 %v768, 1.442695
    %v770 = vpow.pop %v769
    %v771 = vadd.f32 %v770, 1.0
    %v772 = vrcp.pop %v771
    %v773 = vmul.f32 %v771, %v772
    %v774 = vsub.f32 1.0, %v773
    %v775 = vmul.f32 %v772, %v774
    %v776 = vadd.f32 %v772, %v775
    %vm777 = vweird.f32 %v771
    %vm778 = vweird.f32 %v772
    %vm779 = vmor %vm777, %vm778
    %v780 = vsel %vm779, %v772, %v776
    %v781 = vand.u32 2147483647, %v771
    %vm782 = vcmp.eq.f32.partialorder %v781, 8.507059e+37
    %v783 = vand.u32 %v771, 2147483648
    %v784 = vor.u32 1.1754944e-38, %v783
    %v785 = vsel %vm782, %v784, %v780
    %v786 = vmul.f32 1.0, %v785
    %v787 = vtanh.pop %v767
    %v788 = vmul.f32 %v786, %v720
    %790 = vrot.lane.b32.xlu0 %v787, 64
    %v791 = vpop.permute.xlu0 %790
    %v793 = vmul.f32 %v786, %v791
    %795 = vrot.lane.b32.xlu0 %v793, 32
    %v796 = vpop.permute.xlu0 %795
    %v798 = vadd.f32 %v788, %v796
    %v799 = vtanh.pop %v798
    %801 = vrot.lane.b32.xlu0 %v799, 64
    %v802 = vpop.permute.xlu0 %801
    %v804 = vmul.f32 %v786, %v802
    %806 = vrot.lane.b32.xlu0 %v804, 32
    %v807 = vpop.permute.xlu0 %806
    %809 = vrot.lane.b32.xlu0 %v804, 64
    %v810 = vpop.permute.xlu0 %809
    %v812 = vsel %vm135, %v807, %v810
    %v813 = vmul.f32 %v812, %v641
    %v814 = vrot.slane %v605, 2
    %v815 = vrot.slane %v608, 1
    %v816 = vsel %vm653, %v815, %v814
    %v818 = vrot.slane %v628, 3
    %v819 = vrot.slane %v631, 2
    %v820 = vsel %vm660, %v819, %v818
    %v822 = vsel %vm663, %v816, %v820
    %v824 = vsel %vm665, %v813, 0
    %826 = vmatpush.msra.mxu0 0.0
    %827 = vmatpush.msra.mxu0 0.0
    %828 = vmatpush.msra.mxu0 0.0
    %829 = vmatpush.msra.mxu0 0.0
    %830 = vmatpush.msra.mxu0 0.0
    %831 = vmatpush.msra.mxu0 0.0
    %832 = vmatpush.msra.mxu0 0.0
    %833 = vmatpush.msra.mxu0 0.0
    %834 = vmatpush.msra.mxu0 %v649
    %835 = vmatpush.msra.mxu0 %v648
    %836 = vmatpush.msra.mxu0 %v647
    %837 = vmatpush.msra.mxu0 %v646
    %838 = vmatpush.msra.mxu0 %v645
    %839 = vmatpush.msra.mxu0 %v644
    %840 = vmatpush.msra.mxu0 %v643
    %841 = vmatpush.msra.mxu0 %v642
    %842 = vmatmul.f32.gmra.mxu0 %v824
    %v843 = vpop.f32.mrf.mxu0
    %v844 = vadd.f32 0.0, %v843
    %845 = vdwg.mxu0
    %v846 = vadd.f32 %v822, %v844
    %v847 = vxor.u32 %v846, 2147483648
    %v848 = vmul.f32 %v847, 1.442695
    %v849 = vpow.pop %v848
    %v850 = vadd.f32 %v849, 1.0
    %v851 = vrcp.pop %v850
    %v852 = vmul.f32 %v850, %v851
    %v853 = vsub.f32 1.0, %v852
    %v854 = vmul.f32 %v851, %v853
    %v855 = vadd.f32 %v851, %v854
    %vm856 = vweird.f32 %v850
    %vm857 = vweird.f32 %v851
    %vm858 = vmor %vm856, %vm857
    %v859 = vsel %vm858, %v851, %v855
    %v860 = vand.u32 2147483647, %v850
    %vm861 = vcmp.eq.f32.partialorder %v860, 8.507059e+37
    %v862 = vand.u32 %v850, 2147483648
    %v863 = vor.u32 1.1754944e-38, %v862
    %v864 = vsel %vm861, %v863, %v859
    %v865 = vmul.f32 1.0, %v864
    %v866 = vtanh.pop %v846
    %v867 = vmul.f32 %v865, %v798
    %869 = vrot.lane.b32.xlu0 %v866, 64
    %v870 = vpop.permute.xlu0 %869
    %v872 = vmul.f32 %v865, %v870
    %874 = vrot.lane.b32.xlu0 %v872, 32
    %v875 = vpop.permute.xlu0 %874
    %v877 = vadd.f32 %v867, %v875
    %v878 = vtanh.pop %v877
    %880 = vrot.lane.b32.xlu0 %v878, 64
    %v881 = vpop.permute.xlu0 %880
    %v883 = vmul.f32 %v865, %v881
    %885 = vrot.lane.b32.xlu0 %v883, 32
    %v886 = vpop.permute.xlu0 %885
    %888 = vrot.lane.b32.xlu0 %v883, 64
    %v889 = vpop.permute.xlu0 %888
    %v891 = vsel %vm135, %v886, %v889
    %v892 = vmul.f32 %v891, %v641
    %v893 = vrot.slane %v605, 3
    %v894 = vrot.slane %v608, 2
    %v895 = vsel %vm653, %v894, %v893
    %v897 = vrot.slane %v628, 2
    %v898 = vrot.slane %v631, 1
    %v899 = vsel %vm660, %v898, %v897
    %v901 = vsel %vm663, %v895, %v899
    %v903 = vsel %vm665, %v892, 0
    %905 = vmatpush.msra.mxu0 0.0
    %906 = vmatpush.msra.mxu0 0.0
    %907 = vmatpush.msra.mxu0 0.0
    %908 = vmatpush.msra.mxu0 0.0
    %909 = vmatpush.msra.mxu0 0.0
    %910 = vmatpush.msra.mxu0 0.0
    %911 = vmatpush.msra.mxu0 0.0
    %912 = vmatpush.msra.mxu0 0.0
    %913 = vmatpush.msra.mxu0 %v649
    %914 = vmatpush.msra.mxu0 %v648
    %915 = vmatpush.msra.mxu0 %v647
    %916 = vmatpush.msra.mxu0 %v646
    %917 = vmatpush.msra.mxu0 %v645
    %918 = vmatpush.msra.mxu0 %v644
    %919 = vmatpush.msra.mxu0 %v643
    %920 = vmatpush.msra.mxu0 %v642
    %921 = vmatmul.f32.gmra.mxu0 %v903
    %v922 = vpop.f32.mrf.mxu0
    %v923 = vadd.f32 0.0, %v922
    %924 = vdwg.mxu0
    %v925 = vadd.f32 %v901, %v923
    %v926 = vxor.u32 %v925, 2147483648
    %v927 = vmul.f32 %v926, 1.442695
    %v928 = vpow.pop %v927
    %v929 = vadd.f32 %v928, 1.0
    %v930 = vrcp.pop %v929
    %v931 = vmul.f32 %v929, %v930
    %v932 = vsub.f32 1.0, %v931
    %v933 = vmul.f32 %v930, %v932
    %v934 = vadd.f32 %v930, %v933
    %vm935 = vweird.f32 %v929
    %vm936 = vweird.f32 %v930
    %vm937 = vmor %vm935, %vm936
    %v938 = vsel %vm937, %v930, %v934
    %v939 = vand.u32 2147483647, %v929
    %vm940 = vcmp.eq.f32.partialorder %v939, 8.507059e+37
    %v941 = vand.u32 %v929, 2147483648
    %v942 = vor.u32 1.1754944e-38, %v941
    %v943 = vsel %vm940, %v942, %v938
    %v944 = vmul.f32 1.0, %v943
    %v945 = vtanh.pop %v925
    %v946 = vmul.f32 %v944, %v877
    %948 = vrot.lane.b32.xlu0 %v945, 64
    %v949 = vpop.permute.xlu0 %948
    %v951 = vmul.f32 %v944, %v949
    %953 = vrot.lane.b32.xlu0 %v951, 32
    %v954 = vpop.permute.xlu0 %953
    %v956 = vadd.f32 %v946, %v954
    %v957 = vtanh.pop %v956
    %959 = vrot.lane.b32.xlu0 %v957, 64
    %v960 = vpop.permute.xlu0 %959
    %v962 = vmul.f32 %v944, %v960
    %964 = vrot.lane.b32.xlu0 %v962, 32
    %v965 = vpop.permute.xlu0 %964
    %967 = vrot.lane.b32.xlu0 %v962, 64
    %v968 = vpop.permute.xlu0 %967
    %v970 = vsel %vm135, %v965, %v968
    %v971 = vmul.f32 %v970, %v641
    %v972 = vrot.slane %v605, 4
    %v973 = vrot.slane %v608, 3
    %v974 = vsel %vm653, %v973, %v972
    %v976 = vrot.slane %v628, 1
    %v977 = vsel %vm660, %v631, %v976
    %v979 = vsel %vm663, %v974, %v977
    %v981 = vsel %vm665, %v971, 0
    %983 = vmatpush.msra.mxu0 0.0
    %984 = vmatpush.msra.mxu0 0.0
    %985 = vmatpush.msra.mxu0 0.0
    %986 = vmatpush.msra.mxu0 0.0
    %987 = vmatpush.msra.mxu0 0.0
    %988 = vmatpush.msra.mxu0 0.0
    %989 = vmatpush.msra.mxu0 0.0
    %990 = vmatpush.msra.mxu0 0.0
    %991 = vmatpush.msra.mxu0 %v649
    %992 = vmatpush.msra.mxu0 %v648
    %993 = vmatpush.msra.mxu0 %v647
    %994 = vmatpush.msra.mxu0 %v646
    %995 = vmatpush.msra.mxu0 %v645
    %996 = vmatpush.msra.mxu0 %v644
    %997 = vmatpush.msra.mxu0 %v643
    %998 = vmatpush.msra.mxu0 %v642
    %999 = vmatmul.f32.gmra.mxu0 %v981
    %v1000 = vpop.f32.mrf.mxu0
    %v1001 = vadd.f32 0.0, %v1000
    %1002 = vdwg.mxu0
    %v1003 = vadd.f32 %v979, %v1001
    %v1004 = vxor.u32 %v1003, 2147483648
    %v1005 = vmul.f32 %v1004, 1.442695
    %v1006 = vpow.pop %v1005
    %v1007 = vadd.f32 %v1006, 1.0
    %v1008 = vrcp.pop %v1007
    %v1009 = vmul.f32 %v1007, %v1008
    %v1010 = vsub.f32 1.0, %v1009
    %v1011 = vmul.f32 %v1008, %v1010
    %v1012 = vadd.f32 %v1008, %v1011
    %vm1013 = vweird.f32 %v1007
    %vm1014 = vweird.f32 %v1008
    %vm1015 = vmor %vm1013, %vm1014
    %v1016 = vsel %vm1015, %v1008, %v1012
    %v1017 = vand.u32 2147483647, %v1007
    %vm1018 = vcmp.eq.f32.partialorder %v1017, 8.507059e+37
    %v1019 = vand.u32 %v1007, 2147483648
    %v1020 = vor.u32 1.1754944e-38, %v1019
    %v1021 = vsel %vm1018, %v1020, %v1016
    %v1022 = vmul.f32 1.0, %v1021
    %v1023 = vtanh.pop %v1003
    %v1024 = vmul.f32 %v1022, %v956
    %1026 = vrot.lane.b32.xlu0 %v1023, 64
    %v1027 = vpop.permute.xlu0 %1026
    %v1029 = vmul.f32 %v1022, %v1027
    %1031 = vrot.lane.b32.xlu0 %v1029, 32
    %v1032 = vpop.permute.xlu0 %1031
    %v1034 = vadd.f32 %v1024, %v1032
    %v1035 = vtanh.pop %v1034
    %1037 = vrot.lane.b32.xlu0 %v1035, 64
    %v1038 = vpop.permute.xlu0 %1037
    %v1040 = vmul.f32 %v1022, %v1038
    %1042 = vrot.lane.b32.xlu0 %v1040, 32
    %v1043 = vpop.permute.xlu0 %1042
    %1045 = vrot.lane.b32.xlu0 %v1040, 64
    %v1046 = vpop.permute.xlu0 %1045
    %v1048 = vsel %vm135, %v1043, %v1046
    %v1049 = vmul.f32 %v1048, %v641
    %v1050 = vrot.slane %v605, 5
    %v1051 = vrot.slane %v608, 4
    %v1052 = vsel %vm653, %v1051, %v1050
    %v1054 = vrot.slane %v631, 7
    %v1055 = vsel %vm660, %v1054, %v628
    %v1057 = vsel %vm663, %v1052, %v1055
    %v1059 = vsel %vm665, %v1049, 0
    %1061 = vmatpush.msra.mxu0 0.0
    %1062 = vmatpush.msra.mxu0 0.0
    %1063 = vmatpush.msra.mxu0 0.0
    %1064 = vmatpush.msra.mxu0 0.0
    %1065 = vmatpush.msra.mxu0 0.0
    %1066 = vmatpush.msra.mxu0 0.0
    %1067 = vmatpush.msra.mxu0 0.0
    %1068 = vmatpush.msra.mxu0 0.0
    %1069 = vmatpush.msra.mxu0 %v649
    %1070 = vmatpush.msra.mxu0 %v648
    %1071 = vmatpush.msra.mxu0 %v647
    %1072 = vmatpush.msra.mxu0 %v646
    %1073 = vmatpush.msra.mxu0 %v645
    %1074 = vmatpush.msra.mxu0 %v644
    %1075 = vmatpush.msra.mxu0 %v643
    %1076 = vmatpush.msra.mxu0 %v642
    %1077 = vmatmul.f32.gmra.mxu0 %v1059
    %v1078 = vpop.f32.mrf.mxu0
    %v1079 = vadd.f32 0.0, %v1078
    %1080 = vdwg.mxu0
    %v1081 = vadd.f32 %v1057, %v1079
    %v1082 = vxor.u32 %v1081, 2147483648
    %v1083 = vmul.f32 %v1082, 1.442695
    %v1084 = vpow.pop %v1083
    %v1085 = vadd.f32 %v1084, 1.0
    %v1086 = vrcp.pop %v1085
    %v1087 = vmul.f32 %v1085, %v1086
    %v1088 = vsub.f32 1.0, %v1087
    %v1089 = vmul.f32 %v1086, %v1088
    %v1090 = vadd.f32 %v1086, %v1089
    %vm1091 = vweird.f32 %v1085
    %vm1092 = vweird.f32 %v1086
    %vm1093 = vmor %vm1091, %vm1092
    %v1094 = vsel %vm1093, %v1086, %v1090
    %v1095 = vand.u32 2147483647, %v1085
    %vm1096 = vcmp.eq.f32.partialorder %v1095, 8.507059e+37
    %v1097 = vand.u32 %v1085, 2147483648
    %v1098 = vor.u32 1.1754944e-38, %v1097
    %v1099 = vsel %vm1096, %v1098, %v1094
    %v1100 = vmul.f32 1.0, %v1099
    %v1101 = vtanh.pop %v1081
    %v1102 = vmul.f32 %v1100, %v1034
    %1104 = vrot.lane.b32.xlu0 %v1101, 64
    %v1105 = vpop.permute.xlu0 %1104
    %v1107 = vmul.f32 %v1100, %v1105
    %1109 = vrot.lane.b32.xlu0 %v1107, 32
    %v1110 = vpop.permute.xlu0 %1109
    %v1112 = vadd.f32 %v1102, %v1110
    %v1113 = vtanh.pop %v1112
    %1115 = vrot.lane.b32.xlu0 %v1113, 64
    %v1116 = vpop.permute.xlu0 %1115
    %v1118 = vmul.f32 %v1100, %v1116
    %1120 = vrot.lane.b32.xlu0 %v1118, 32
    %v1121 = vpop.permute.xlu0 %1120
    %1123 = vrot.lane.b32.xlu0 %v1118, 64
    %v1124 = vpop.permute.xlu0 %1123
    %v1126 = vsel %vm135, %v1121, %v1124
    %v1127 = vmul.f32 %v1126, %v641
    %v1128 = vrot.slane %v605, 6
    %v1129 = vrot.slane %v608, 5
    %v1130 = vsel %vm653, %v1129, %v1128
    %v1132 = vrot.slane %v628, 7
    %v1133 = vrot.slane %v631, 6
    %v1134 = vsel %vm660, %v1133, %v1132
    %v1136 = vsel %vm663, %v1130, %v1134
    %v1138 = vsel %vm665, %v1127, 0
    %1140 = vmatpush.msra.mxu0 0.0
    %1141 = vmatpush.msra.mxu0 0.0
    %1142 = vmatpush.msra.mxu0 0.0
    %1143 = vmatpush.msra.mxu0 0.0
    %1144 = vmatpush.msra.mxu0 0.0
    %1145 = vmatpush.msra.mxu0 0.0
    %1146 = vmatpush.msra.mxu0 0.0
    %1147 = vmatpush.msra.mxu0 0.0
    %1148 = vmatpush.msra.mxu0 %v649
    %1149 = vmatpush.msra.mxu0 %v648
    %1150 = vmatpush.msra.mxu0 %v647
    %1151 = vmatpush.msra.mxu0 %v646
    %1152 = vmatpush.msra.mxu0 %v645
    %1153 = vmatpush.msra.mxu0 %v644
    %1154 = vmatpush.msra.mxu0 %v643
    %1155 = vmatpush.msra.mxu0 %v642
    %1156 = vmatmul.f32.gmra.mxu0 %v1138
    %v1157 = vpop.f32.mrf.mxu0
    %v1158 = vadd.f32 0.0, %v1157
    %1159 = vdwg.mxu0
    %v1160 = vadd.f32 %v1136, %v1158
    %v1161 = vxor.u32 %v1160, 2147483648
    %v1162 = vmul.f32 %v1161, 1.442695
    %v1163 = vpow.pop %v1162
    %v1164 = vadd.f32 %v1163, 1.0
    %v1165 = vrcp.pop %v1164
    %v1166 = vmul.f32 %v1164, %v1165
    %v1167 = vsub.f32 1.0, %v1166
    %v1168 = vmul.f32 %v1165, %v1167
    %v1169 = vadd.f32 %v1165, %v1168
    %vm1170 = vweird.f32 %v1164
    %vm1171 = vweird.f32 %v1165
    %vm1172 = vmor %vm1170, %vm1171
    %v1173 = vsel %vm1172, %v1165, %v1169
    %v1174 = vand.u32 2147483647, %v1164
    %vm1175 = vcmp.eq.f32.partialorder %v1174, 8.507059e+37
    %v1176 = vand.u32 %v1164, 2147483648
    %v1177 = vor.u32 1.1754944e-38, %v1176
    %v1178 = vsel %vm1175, %v1177, %v1173
    %v1179 = vmul.f32 1.0, %v1178
    %v1180 = vtanh.pop %v1160
    %v1181 = vmul.f32 %v1179, %v1112
    %1183 = vrot.lane.b32.xlu0 %v1180, 64
    %v1184 = vpop.permute.xlu0 %1183
    %v1186 = vmul.f32 %v1179, %v1184
    %1188 = vrot.lane.b32.xlu0 %v1186, 32
    %v1189 = vpop.permute.xlu0 %1188
    %v1191 = vadd.f32 %v1181, %v1189
    %v1192 = vtanh.pop %v1191
    %1194 = vrot.lane.b32.xlu0 %v1192, 64
    %v1195 = vpop.permute.xlu0 %1194
    %v1197 = vmul.f32 %v1179, %v1195
    %1199 = vrot.lane.b32.xlu0 %v1197, 32
    %v1200 = vpop.permute.xlu0 %1199
    %1202 = vrot.lane.b32.xlu0 %v1197, 64
    %v1203 = vpop.permute.xlu0 %1202
    %v1205 = vsel %vm135, %v1200, %v1203
    %v1206 = vmul.f32 %v1205, %v641
    %v1207 = vrot.slane %v605, 7
    %v1208 = vrot.slane %v608, 6
    %v1209 = vsel %vm653, %v1208, %v1207
    %v1211 = vrot.slane %v628, 6
    %v1212 = vrot.slane %v631, 5
    %v1213 = vsel %vm660, %v1212, %v1211
    %v1215 = vsel %vm663, %v1209, %v1213
    %v1217 = vsel %vm665, %v1206, 0
    %1219 = vmatpush.msra.mxu0 0.0
    %1220 = vmatpush.msra.mxu0 0.0
    %1221 = vmatpush.msra.mxu0 0.0
    %1222 = vmatpush.msra.mxu0 0.0
    %1223 = vmatpush.msra.mxu0 0.0
    %1224 = vmatpush.msra.mxu0 0.0
    %1225 = vmatpush.msra.mxu0 0.0
    %1226 = vmatpush.msra.mxu0 0.0
    %1227 = vmatpush.msra.mxu0 %v649
    %1228 = vmatpush.msra.mxu0 %v648
    %1229 = vmatpush.msra.mxu0 %v647
    %1230 = vmatpush.msra.mxu0 %v646
    %1231 = vmatpush.msra.mxu0 %v645
    %1232 = vmatpush.msra.mxu0 %v644
    %1233 = vmatpush.msra.mxu0 %v643
    %1234 = vmatpush.msra.mxu0 %v642
    %1235 = vmatmul.f32.gmra.mxu0 %v1217
    %v1236 = vpop.f32.mrf.mxu0
    %v1237 = vadd.f32 0.0, %v1236
    %1238 = vdwg.mxu0
    %v1239 = vadd.f32 %v1215, %v1237
    %v1240 = vxor.u32 %v1239, 2147483648
    %v1241 = vmul.f32 %v1240, 1.442695
    %v1242 = vpow.pop %v1241
    %v1243 = vadd.f32 %v1242, 1.0
    %v1244 = vrcp.pop %v1243
    %v1245 = vmul.f32 %v1243, %v1244
    %v1246 = vsub.f32 1.0, %v1245
    %v1247 = vmul.f32 %v1244, %v1246
    %v1248 = vadd.f32 %v1244, %v1247
    %vm1249 = vweird.f32 %v1243
    %vm1250 = vweird.f32 %v1244
    %vm1251 = vmor %vm1249, %vm1250
    %v1252 = vsel %vm1251, %v1244, %v1248
    %v1253 = vand.u32 2147483647, %v1243
    %vm1254 = vcmp.eq.f32.partialorder %v1253, 8.507059e+37
    %v1255 = vand.u32 %v1243, 2147483648
    %v1256 = vor.u32 1.1754944e-38, %v1255
    %v1257 = vsel %vm1254, %v1256, %v1252
    %v1258 = vmul.f32 1.0, %v1257
    %v1259 = vtanh.pop %v1239
    %v1260 = vmul.f32 %v1258, %v1191
    %1262 = vrot.lane.b32.xlu0 %v1259, 64
    %v1263 = vpop.permute.xlu0 %1262
    %v1265 = vmul.f32 %v1258, %v1263
    %1267 = vrot.lane.b32.xlu0 %v1265, 32
    %v1268 = vpop.permute.xlu0 %1267
    %v1270 = vadd.f32 %v1260, %v1268
    %v1271 = vtanh.pop %v1270
    %1273 = vrot.lane.b32.xlu0 %v1271, 64
    %v1274 = vpop.permute.xlu0 %1273
    %v1276 = vmul.f32 %v1258, %v1274
    %v1278 = vrot.slane %v1276, 2
    %1279 = vrot.lane.b32.xlu0 %v1278, 64
    %v1280 = vpop.permute.xlu0 %1279
    %v1282 = vsel %vm135, %v729, %v1280
    %v1283 = vrot.slane %v1197, 2
    %1284 = vrot.lane.b32.xlu0 %v1283, 64
    %v1285 = vpop.permute.xlu0 %1284
    %v1287 = vsel %vm135, %v807, %v1285
    %v1288 = vrot.slane %v1118, 2
    %1289 = vrot.lane.b32.xlu0 %v1288, 64
    %v1290 = vpop.permute.xlu0 %1289
    %v1292 = vsel %vm135, %v886, %v1290
    %v1293 = vrot.slane %v1040, 2
    %1294 = vrot.lane.b32.xlu0 %v1293, 64
    %v1295 = vpop.permute.xlu0 %1294
    %v1297 = vsel %vm135, %v965, %v1295
    %v1298 = vrot.slane %v962, 2
    %1299 = vrot.lane.b32.xlu0 %v1298, 64
    %v1300 = vpop.permute.xlu0 %1299
    %v1302 = vsel %vm135, %v1043, %v1300
    %v1303 = vrot.slane %v883, 2
    %1304 = vrot.lane.b32.xlu0 %v1303, 64
    %v1305 = vpop.permute.xlu0 %1304
    %v1307 = vsel %vm135, %v1121, %v1305
    %v1308 = vrot.slane %v804, 2
    %1309 = vrot.lane.b32.xlu0 %v1308, 64
    %v1310 = vpop.permute.xlu0 %1309
    %v1312 = vsel %vm135, %v1200, %v1310
    %1313 = vrot.lane.b32.xlu0 %v1276, 32
    %v1314 = vpop.permute.xlu0 %1313
    %v1316 = vrot.slane %v726, 2
    %1317 = vrot.lane.b32.xlu0 %v1316, 64
    %v1318 = vpop.permute.xlu0 %1317
    %v1320 = vsel %vm135, %v1314, %v1318
    %v1322 = vrot.slane %v1282, 1
    %v1325 = vrot.slane %v1287, 1
    %v1327 = vrot.slane %v1292, 1
    %v1329 = vrot.slane %v1297, 1
    %v1331 = vrot.slane %v1302, 1
    %v1333 = vrot.slane %v1307, 1
    %v1335 = vrot.slane %v1312, 1
    %v1337 = vrot.slane %v1320, 1
    %v1338 = vperm.slane %v1287, 0
    %v1339 = vperm.slane %v1325, 0
    %v1342 = vperm.slane %v1292, 0
    %v1343 = vperm.slane %v1327, 0
    %v1346 = vperm.slane %v1297, 0
    %v1347 = vperm.slane %v1329, 0
    %v1350 = vperm.slane %v1302, 0
    %v1351 = vperm.slane %v1331, 0
    %v1354 = vperm.slane %v1307, 0
    %v1355 = vperm.slane %v1333, 0
    %v1358 = vperm.slane %v1312, 0
    %v1359 = vperm.slane %v1335, 0
    %v1362 = vperm.slane %v1320, 0
    %v1363 = vperm.slane %v1337, 0
    %vm1366 = vcmask 1040384
    %v1367 = vsel %vm1366, %v1282, %v1338
    %v1368 = vsel %vm1366, %v1322, %v1339
    %v1369 = vsel %vm663, %v1367, %v1342
    %v1370 = vsel %vm663, %v1368, %v1343
    %vm1371 = vcmask 1042432
    %v1372 = vsel %vm1371, %v1369, %v1346
    %v1373 = vsel %vm1371, %v1370, %v1347
    %vm1374 = vcmask 1043456
    %v1375 = vsel %vm1374, %v1372, %v1350
    %v1376 = vsel %vm1374, %v1373, %v1351
    %vm1377 = vcmask 1044480
    %v1378 = vsel %vm1377, %v1375, %v1354
    %v1379 = vsel %vm1377, %v1376, %v1355
    %vm1380 = vcmask 1045504
    %v1381 = vsel %vm1380, %v1378, %v1358
    %v1382 = vsel %vm1380, %v1379, %v1359
    %vm1383 = vcmask 1046528
    %v1384 = vsel %vm1383, %v1381, %v1362
    %v1385 = vsel %vm1383, %v1382, %v1363
    %v1386 = vld [vmem:[#allocation10] sm:$0xff]
    %v1387 = vld [vmem:[#allocation10 + $0x8] sm:$0xff]
    %v1388 = vld [vmem:[#allocation10 + $0x10] sm:$0xff]
    %v1389 = vld [vmem:[#allocation10 + $0x18] sm:$0xff]
    %v1390 = vld [vmem:[#allocation10 + $0x20] sm:$0xff]
    %v1391 = vld [vmem:[#allocation10 + $0x28] sm:$0xff]
    %v1392 = vld [vmem:[#allocation10 + $0x30] sm:$0xff]
    %v1393 = vld [vmem:[#allocation10 + $0x38] sm:$0xff]
    %v1394 = vld [vmem:[%s13] sm:$0x1]
    %v1396 = vperm.slane %v1394, 0
    %v1399 = vsel %vm665, %v1384, 0
    %v1402 = vsel %vm665, %v1385, 0
    %1404 = vmatpush.msra.mxu0 0.0
    %1405 = vmatpush.msra.mxu0 0.0
    %1406 = vmatpush.msra.mxu0 0.0
    %1407 = vmatpush.msra.mxu0 0.0
    %1408 = vmatpush.msra.mxu0 0.0
    %1409 = vmatpush.msra.mxu0 0.0
    %1410 = vmatpush.msra.mxu0 0.0
    %1411 = vmatpush.msra.mxu0 0.0
    %1412 = vmatpush.msra.mxu0 %v1393
    %1413 = vmatpush.msra.mxu0 %v1392
    %1414 = vmatpush.msra.mxu0 %v1391
    %1415 = vmatpush.msra.mxu0 %v1390
    %1416 = vmatpush.msra.mxu0 %v1389
    %1417 = vmatpush.msra.mxu0 %v1388
    %1418 = vmatpush.msra.mxu0 %v1387
    %1419 = vmatpush.msra.mxu0 %v1386
    %1420 = vmatmul.f32.gmra.mxu0 %v1399
    %v1421 = vpop.f32.mrf.mxu0
    %v1422 = vadd.f32 %v1396, %v1421
    %1423 = vmatmul.f32.gmra.mxu0 %v1402
    %v1424 = vpop.f32.mrf.mxu0
    %v1425 = vadd.f32 %v1396, %v1424
    %1426 = vdwg.mxu0
    %1427 = vst [vmem:[#allocation11] sm:$0xff] %v1422
    %1428 = vst [vmem:[#allocation11 + $0x8] sm:$0xff] %v1425
    // Predicated region
    $region78: #{tpu_custom_call.1} parent=1 // pred_check
      _
    $region79: #{tpu_custom_call.1} parent=1 // pred_check_branch
      %1430 = sbr.rel (0) target = $region81
    $region80: #{tpu_custom_call.1} parent=1 // pred_region
      %1432 = vsyncadd [#allocation4], 0
      %s1433 = sshll.u32 [#allocation11], 4
      %s1434 = int_to_ptr.vmem [resolvable:$true] %s1433
      %s1435 = sshll.u32 %s14, 4
      %s1436 = int_to_ptr.hbm [resolvable:$true] %s1435
      %1441 = dma.vmem_to_hbm [thread:$0]  %s1434, 256, %s1436, [#allocation4], 128, 128, 8
    $region81: #{tpu_custom_call.1} parent=1 // pred_fallthru
      _
    // Predicated region
    $region82: #{tpu_custom_call.1} parent=1 // pred_check
      _
    $region83: #{tpu_custom_call.1} parent=1 // pred_check_branch
      %1443 = sbr.rel (0) target = $region85
    $region84: #{tpu_custom_call.1} parent=1 // pred_region
      %1445 = dma.done [#allocation4], 256
    $region85: #{tpu_custom_call.1} parent=1 // pred_fallthru
      _
    %1446 = vsyncpa [#allocation3], 1
    %1447 = vsyncpa [#allocation6], 1
    %1448 = vsyncpa [#allocation9], 1
    %1449 = vsyncpa [#allocation4], 1

</llo_original>
